<compile_context>
chip_gen: v7x
topology: tpu7x:2x2x1
jax: 0.10.0
libtpu: 0.0.40
codegen_flags: <defaults>
</compile_context>

<pallas_src>
import functools

import jax
import jax.numpy as jnp
import numpy as np
from jax.experimental import pallas as pl
from jax.experimental.pallas import tpu as pltpu

K = 3          # conv kernel size
STRIDE = 2
PAD = 1
SE_RATIO = 8
BN_EPS = 1e-5


def _conv_out(n):
    return (n + 2 * PAD - K) // STRIDE + 1


# --------------------------------------------------------------------------
# Kernel
# --------------------------------------------------------------------------
def _double_conv_kernel(patch1_ref, w1_ref, w2_ref, vec_ref, fcw_ref,
                        o_ref, hp_ref, *, dims):
    B, Ho1, Wo1, Ho2, Wo2, Cout = dims
    n2 = B * Ho2 * Wo2

    def bn_elu(acc, gamma, beta):
        # Single-pass BatchNorm stats (E[x^2] - mean^2), folded into one FMA.
        mean = jnp.mean(acc, axis=0, keepdims=True)                    # (1, C)
        var = jnp.maximum(
            jnp.mean(acc * acc, axis=0, keepdims=True) - mean * mean, 0.0)
        scale = gamma * jax.lax.rsqrt(var + BN_EPS)
        shift = beta - mean * scale
        y = acc * scale + shift
        return jnp.where(y > 0, y, jnp.exp(y) - 1.0)                   # ELU(a=1)

    g1, b1 = vec_ref[0:1, :], vec_ref[1:2, :]
    g2, b2 = vec_ref[2:3, :], vec_ref[3:4, :]
    fc1b, fc2b = vec_ref[4:5, :], vec_ref[5:6, :]

    # ---- conv1: pre-built im2col patch (bf16) -> single MXU matmul (K=36).
    acc1 = jnp.dot(patch1_ref[...], w1_ref[...],
                   preferred_element_type=jnp.float32)                 # (n1, Cout)
    h1 = bn_elu(acc1, g1, b1)

    # Stage h1 with a single zero row on top (H is a leading dim, so the
    # offset-1 store is a plain address offset: no masked sublane writes).
    hp_ref[:, 0:1, :, :] = jnp.zeros((B, 1, Wo1, Cout), jnp.float32)
    hp_ref[:, 1:, :, :] = h1.reshape(B, Ho1, Wo1, Cout)

    # ---- conv2: in-kernel im2col -> single MXU matmul (K*K*Cout = 144).
    # Output (i2, j2) tap (kh, kw) reads h1[2*i2-1+kh, 2*j2-1+kw]; rows come
    # from the H-padded scratch.  The single out-of-range column (kw=0, j2=0)
    # is built with a sublane roll (XLU) + iota mask (VPU) - no copies.
    taps2 = []
    for kh in range(K):
        rows = pl.ds(kh, Ho2, stride=STRIDE)             # hp rows 2*i2 + kh
        for kw in range(K):
            if kw == 0:
                t = hp_ref[:, rows, pl.ds(1, Wo2, stride=STRIDE), :]   # col 2*j2+1
                t = pltpu.roll(t, shift=1, axis=2)                     # -> col 2*j2-1
                col = jax.lax.broadcasted_iota(jnp.int32, t.shape, 2)
                t = jnp.where(col == 0, 0.0, t)                        # left pad
            else:
                t = hp_ref[:, rows, pl.ds(kw - 1, Wo2, stride=STRIDE), :]
            taps2.append(t.reshape(n2, Cout))
    patch2 = jnp.concatenate(taps2, axis=-1).astype(jnp.bfloat16)      # (n2, 144)
    acc2 = jnp.dot(patch2, w2_ref[...], preferred_element_type=jnp.float32)
    h2 = bn_elu(acc2, g2, b2)                                          # (n2, Cout)

    # ---- SqueezeExcitation (hidden dim zero-padded to Cout lanes; f32 math).
    pooled = jnp.mean(h2.reshape(B, Ho2 * Wo2, Cout), axis=1)          # (B, Cout)
    fc1w = fcw_ref[0:Cout, :]
    fc2w = fcw_ref[Cout:, :]
    z = jnp.maximum(
        jnp.dot(pooled, fc1w, preferred_element_type=jnp.float32) + fc1b, 0.0)
    gate = jax.nn.sigmoid(
        jnp.dot(z, fc2w, preferred_element_type=jnp.float32) + fc2b)   # (B, Cout)

    out = h2.reshape(B, Ho2, Wo2, Cout) * gate.reshape(B, 1, 1, Cout)
    o_ref[...] = out.astype(o_ref.dtype)


# --------------------------------------------------------------------------
# One-time parameter preparation (hoisted out of the per-forward path).
# --------------------------------------------------------------------------
def prepare_params(p):
    Cout, Cin = p["w1"].shape[0], p["w1"].shape[1]
    hidden = p["fc1_w"].shape[0]
    # conv weights (Cout,Cin,kh,kw) -> im2col layout (kh,kw,cin)xCout, bf16.
    w1 = jnp.transpose(p["w1"], (2, 3, 1, 0)).reshape(K * K * Cin, Cout)
    w2 = jnp.transpose(p["w2"], (2, 3, 1, 0)).reshape(K * K * Cout, Cout)
    # Six per-channel vectors packed into one (6, Cout) slab (fc1_b zero-padded).
    vecs = jnp.zeros((6, Cout), jnp.float32)
    vecs = vecs.at[0].set(p["g1"]).at[1].set(p["b1"])
    vecs = vecs.at[2].set(p["g2"]).at[3].set(p["b2"])
    vecs = vecs.at[4, :hidden].set(p["fc1_b"]).at[5].set(p["fc2_b"])
    # SE weights bundled into one (2*Cout, Cout) slab, hidden dim zero-padded.
    fcw = jnp.zeros((2 * Cout, Cout), jnp.float32)
    fcw = fcw.at[:Cout, :hidden].set(p["fc1_w"].T)
    fcw = fcw.at[Cout:Cout + hidden, :].set(p["fc2_w"].T)
    return dict(w1=w1.astype(jnp.bfloat16), w2=w2.astype(jnp.bfloat16),
                vecs=vecs, fcw=fcw)


# --------------------------------------------------------------------------
# Forward pass
# --------------------------------------------------------------------------
def double_conv_forward_nhwc(x_nhwc, pp):
    """NHWC-native forward: (B,H,W,Cin) -> (B,H//4,W//4,Cout)."""
    B, H, W, Cin = x_nhwc.shape
    assert H % 4 == 0 and W % 4 == 0, "kernel assumes H, W divisible by 4"
    Cout = pp["vecs"].shape[1]
    Ho1, Wo1 = _conv_out(H), _conv_out(W)
    Ho2, Wo2 = _conv_out(Ho1), _conv_out(Wo1)
    n1 = B * Ho1 * Wo1

    # conv1 im2col in the wrapper (fuses with the caller's layout transform
    # under jit).  Top/left-only pad: the bottom/right pad of k=3,s=2,p=1 on
    # even H/W is never read.
    xp = jnp.pad(x_nhwc, ((0, 0), (PAD, 0), (PAD, 0), (0, 0)))
    taps = [xp[:, kh:kh + STRIDE * Ho1:STRIDE, kw:kw + STRIDE * Wo1:STRIDE, :]
            for kh in range(K) for kw in range(K)]
    patch1 = (jnp.concatenate(taps, axis=-1)
              .reshape(n1, K * K * Cin)
              .astype(jnp.bfloat16))

    def full(shape):
        n = len(shape)
        return pl.BlockSpec(shape, lambda i: (0,) * n)

    kernel = functools.partial(
        _double_conv_kernel, dims=(B, Ho1, Wo1, Ho2, Wo2, Cout))

    return pl.pallas_call(
        kernel,
        out_shape=jax.ShapeDtypeStruct((B, Ho2, Wo2, Cout), x_nhwc.dtype),
        grid_spec=pltpu.PrefetchScalarGridSpec(
            num_scalar_prefetch=0,
            grid=(1,),
            in_specs=[
                full((n1, K * K * Cin)),        # conv1 im2col patch (bf16)
                full((K * K * Cin, Cout)),      # conv1 weight (bf16)
                full((K * K * Cout, Cout)),     # conv2 weight (bf16)
                full((6, Cout)),                # g1,b1,g2,b2,fc1_b,fc2_b
                full((2 * Cout, Cout)),         # SE fc1 / fc2 weights (padded)
            ],
            out_specs=full((B, Ho2, Wo2, Cout)),
            scratch_shapes=[
                # conv1 output staged with ONE extra (zero) row along H only.
                pltpu.VMEM((B, Ho1 + 1, Wo1, Cout), jnp.float32),
            ],
        ),
        compiler_params=pltpu.CompilerParams(
            dimension_semantics=("arbitrary",),
            vmem_limit_bytes=32 * 1024 * 1024),
    )(patch1, pp["w1"], pp["w2"], pp["vecs"], pp["fcw"])


@jax.jit
def double_conv_forward(x_nchw, pp):
    """NCHW wrapper matching PyTorch: (B,Cin,H,W) -> (B,Cout,H//4,W//4).

    Jitted so the NCHW->NHWC transpose + pad + im2col fuse into one XLA pass
    and the output transpose into another (minimal dispatch overhead).
    Prefer `double_conv_forward_nhwc` if the caller can stay NHWC end-to-end.
    """
    x_nhwc = jnp.transpose(x_nchw, (0, 2, 3, 1))
    out_nhwc = double_conv_forward_nhwc(x_nhwc, pp)
    return jnp.transpose(out_nhwc, (0, 3, 1, 2))


# --------------------------------------------------------------------------
# Parameters & reference
# --------------------------------------------------------------------------
def make_params(key, cin, cout):
    hidden = cout // SE_RATIO
    ks = jax.random.split(key, 10)
    nrm = lambda k, shape, s: s * jax.random.normal(k, shape, jnp.float32)
    return dict(
        w1=nrm(ks[0], (cout, cin, K, K), 0.3),
        g1=1.0 + nrm(ks[1], (cout,), 0.1),
        b1=nrm(ks[2], (cout,), 0.1),
        w2=nrm(ks[3], (cout, cout, K, K), 0.2),
        g2=1.0 + nrm(ks[4], (cout,), 0.1),
        b2=nrm(ks[5], (cout,), 0.1),
        fc1_w=nrm(ks[6], (hidden, cout), 0.3),
        fc1_b=nrm(ks[7], (hidden,), 0.1),
        fc2_w=nrm(ks[8], (cout, hidden), 0.3),
        fc2_b=nrm(ks[9], (cout,), 0.1),
    )


def reference_forward(x, p):
    """Plain-JAX reference (NCHW) used only to validate the kernel."""
    def block(x, w, g, b):
        y = jax.lax.conv_general_dilated(
            x, w, window_strides=(STRIDE, STRIDE),
            padding=((PAD, PAD), (PAD, PAD)),
            dimension_numbers=("NCHW", "OIHW", "NCHW"),
            precision=jax.lax.Precision.HIGHEST)
        mean = y.mean(axis=(0, 2, 3), keepdims=True)
        var = ((y - mean) ** 2).mean(axis=(0, 2, 3), keepdims=True)
        y = (y - mean) / jnp.sqrt(var + BN_EPS) * g[None, :, None, None] \
            + b[None, :, None, None]
        return jnp.where(y > 0, y, jnp.exp(y) - 1.0)

    h = block(x, p["w1"], p["g1"], p["b1"])
    h = block(h, p["w2"], p["g2"], p["b2"])
    pooled = h.mean(axis=(2, 3))                                   # (B, C)
    z = jnp.maximum(pooled @ p["fc1_w"].T + p["fc1_b"], 0.0)
    gate = jax.nn.sigmoid(z @ p["fc2_w"].T + p["fc2_b"])
    return h * gate[:, :, None, None]


if __name__ == "__main__":
    B, Cin, Cout, H, W = 2, 4, 16, 16, 16
    kx, kp = jax.random.split(jax.random.PRNGKey(0))
    x = jax.random.normal(kx, (B, Cin, H, W), jnp.float32)
    params = make_params(kp, Cin, Cout)
    prepped = prepare_params(params)          # one-time param prep (hoisted)

    out = jax.block_until_ready(double_conv_forward(x, prepped))
    ref = jax.block_until_ready(reference_forward(x, params))

    assert out.shape == (B, Cout, H // 4, W // 4), out.shape
    # bf16 MXU operands (per perf review for v6e/v7x) shift results by a few
    # 1e-3 vs the HIGHEST-precision f32 reference; accumulation stays f32.
    # atol widened to 2e-2 to cover the tail of that quantization noise.
    assert np.allclose(np.asarray(out), np.asarray(ref), rtol=1e-2, atol=2e-2), (
        float(jnp.max(jnp.abs(out - ref))))
    print("KERNEL_OK")
</pallas_src>

<mosaic_0001>
module attributes {stable_mosaic.version = 11 : i64} {
  func.func @_double_conv_kernel(%arg0: i32, %arg1: memref<128x36xbf16, #tpu.memory_space<vmem>>, %arg2: memref<36x16xbf16, #tpu.memory_space<vmem>>, %arg3: memref<144x16xbf16, #tpu.memory_space<vmem>>, %arg4: memref<6x16xf32, #tpu.memory_space<vmem>>, %arg5: memref<32x16xf32, #tpu.memory_space<vmem>>, %arg6: memref<2x4x4x16xf32, #tpu.memory_space<vmem>>, %arg7: memref<2x9x8x16xf32, #tpu.memory_space<vmem>>) attributes {dimension_semantics = [#tpu.dimension_semantics<arbitrary>], iteration_bounds = array<i64: 1>, scalar_prefetch = 0 : i64, scratch_operands = 1 : i64, tpu.core_type = #tpu.core_type<tc>, window_params = [{pipeline_mode = #tpu.pipeline_mode<synchronous>, transform_indices = @transform_0, window_bounds = array<i64: 128, 36>}, {pipeline_mode = #tpu.pipeline_mode<synchronous>, transform_indices = @transform_1, window_bounds = array<i64: 36, 16>}, {pipeline_mode = #tpu.pipeline_mode<synchronous>, transform_indices = @transform_2, window_bounds = array<i64: 144, 16>}, {pipeline_mode = #tpu.pipeline_mode<synchronous>, transform_indices = @transform_3, window_bounds = array<i64: 6, 16>}, {pipeline_mode = #tpu.pipeline_mode<synchronous>, transform_indices = @transform_4, window_bounds = array<i64: 32, 16>}, {pipeline_mode = #tpu.pipeline_mode<synchronous>, transform_indices = @transform_5, window_bounds = array<i64: 2, 4, 4, 16>}]} {
    %c0 = arith.constant 0 : index
    %c0_0 = arith.constant 0 : index
    %0 = vector.load %arg4[%c0, %c0_0] : memref<6x16xf32, #tpu.memory_space<vmem>>, vector<1x16xf32>
    %c1 = arith.constant 1 : index
    %c0_1 = arith.constant 0 : index
    %1 = vector.load %arg4[%c1, %c0_1] : memref<6x16xf32, #tpu.memory_space<vmem>>, vector<1x16xf32>
    %c2 = arith.constant 2 : index
    %c0_2 = arith.constant 0 : index
    %2 = vector.load %arg4[%c2, %c0_2] : memref<6x16xf32, #tpu.memory_space<vmem>>, vector<1x16xf32>
    %c3 = arith.constant 3 : index
    %c0_3 = arith.constant 0 : index
    %3 = vector.load %arg4[%c3, %c0_3] : memref<6x16xf32, #tpu.memory_space<vmem>>, vector<1x16xf32>
    %c4 = arith.constant 4 : index
    %c0_4 = arith.constant 0 : index
    %4 = vector.load %arg4[%c4, %c0_4] : memref<6x16xf32, #tpu.memory_space<vmem>>, vector<1x16xf32>
    %c5 = arith.constant 5 : index
    %c0_5 = arith.constant 0 : index
    %5 = vector.load %arg4[%c5, %c0_5] : memref<6x16xf32, #tpu.memory_space<vmem>>, vector<1x16xf32>
    %c0_6 = arith.constant 0 : index
    %c0_7 = arith.constant 0 : index
    %6 = vector.load %arg1[%c0_6, %c0_7] : memref<128x36xbf16, #tpu.memory_space<vmem>>, vector<128x36xbf16>
    %c0_8 = arith.constant 0 : index
    %c0_9 = arith.constant 0 : index
    %7 = vector.load %arg2[%c0_8, %c0_9] : memref<36x16xbf16, #tpu.memory_space<vmem>>, vector<36x16xbf16>
    %cst = arith.constant dense<0.000000e+00> : vector<128x16xf32>
    %8 = tpu.matmul %6, %7, %cst {dimension_numbers = #tpu.dot_dimension_numbers<[1], [0], [0], [1], [0, 0, 1, 1], [], []>} : vector<128x36xbf16>, vector<36x16xbf16>, vector<128x16xf32> -> vector<128x16xf32>
    %cst_10 = arith.constant dense<0.000000e+00> : vector<16xf32>
    %9 = vector.multi_reduction <add>, %8, %cst_10 [0] : vector<128x16xf32> to vector<16xf32>
    %10 = vector.shape_cast %9 : vector<16xf32> to vector<1x16xf32>
    %cst_11 = arith.constant 1.280000e+02 : f32
    %11 = vector.broadcast %cst_11 : f32 to vector<1x16xf32>
    %12 = arith.divf %10, %11 : vector<1x16xf32>
    %13 = arith.mulf %8, %8 : vector<128x16xf32>
    %cst_12 = arith.constant dense<0.000000e+00> : vector<16xf32>
    %14 = vector.multi_reduction <add>, %13, %cst_12 [0] : vector<128x16xf32> to vector<16xf32>
    %15 = vector.shape_cast %14 : vector<16xf32> to vector<1x16xf32>
    %cst_13 = arith.constant 1.280000e+02 : f32
    %16 = vector.broadcast %cst_13 : f32 to vector<1x16xf32>
    %17 = arith.divf %15, %16 : vector<1x16xf32>
    %18 = arith.mulf %12, %12 : vector<1x16xf32>
    %19 = arith.subf %17, %18 : vector<1x16xf32>
    %cst_14 = arith.constant 0.000000e+00 : f32
    %20 = vector.broadcast %cst_14 : f32 to vector<1x16xf32>
    %21 = arith.maximumf %19, %20 : vector<1x16xf32>
    %cst_15 = arith.constant 9.99999974E-6 : f32
    %22 = vector.broadcast %cst_15 : f32 to vector<1x16xf32>
    %23 = arith.addf %21, %22 : vector<1x16xf32>
    %24 = math.rsqrt %23 : vector<1x16xf32>
    %25 = arith.mulf %0, %24 : vector<1x16xf32>
    %26 = arith.mulf %12, %25 : vector<1x16xf32>
    %27 = arith.subf %1, %26 : vector<1x16xf32>
    %28 = vector.broadcast %25 : vector<1x16xf32> to vector<128x16xf32>
    %29 = arith.mulf %8, %28 : vector<128x16xf32>
    %30 = vector.broadcast %27 : vector<1x16xf32> to vector<128x16xf32>
    %31 = arith.addf %29, %30 : vector<128x16xf32>
    %cst_16 = arith.constant 0.000000e+00 : f32
    %32 = vector.broadcast %cst_16 : f32 to vector<128x16xf32>
    %33 = arith.cmpf ogt, %31, %32 : vector<128x16xf32>
    %34 = math.exp %31 : vector<128x16xf32>
    %cst_17 = arith.constant 1.000000e+00 : f32
    %35 = vector.broadcast %cst_17 : f32 to vector<128x16xf32>
    %36 = arith.subf %34, %35 : vector<128x16xf32>
    %37 = arith.select %33, %31, %36 : vector<128x16xi1>, vector<128x16xf32>
    %cst_18 = arith.constant 0.000000e+00 : f32
    %38 = vector.broadcast %cst_18 : f32 to vector<2x1x8x16xf32>
    %c0_19 = arith.constant 0 : index
    %c0_20 = arith.constant 0 : index
    %c0_21 = arith.constant 0 : index
    %c0_22 = arith.constant 0 : index
    %39 = vector.load %arg7[%c0_19, %c0_20, %c0_21, %c0_22] : memref<2x9x8x16xf32, #tpu.memory_space<vmem>>, vector<2x1x8x16xf32>
    tpu.vector_store %arg7[%c0_19, %c0_20, %c0_21, %c0_22], %38 {strides = array<i32>} : memref<2x9x8x16xf32, #tpu.memory_space<vmem>>, vector<2x1x8x16xf32>,
    %40 = vector.shape_cast %37 : vector<128x16xf32> to vector<2x8x8x16xf32>
    %c0_23 = arith.constant 0 : index
    %c1_24 = arith.constant 1 : index
    %c0_25 = arith.constant 0 : index
    %c0_26 = arith.constant 0 : index
    %41 = vector.load %arg7[%c0_23, %c1_24, %c0_25, %c0_26] : memref<2x9x8x16xf32, #tpu.memory_space<vmem>>, vector<2x8x8x16xf32>
    tpu.vector_store %arg7[%c0_23, %c1_24, %c0_25, %c0_26], %40 {strides = array<i32>} : memref<2x9x8x16xf32, #tpu.memory_space<vmem>>, vector<2x8x8x16xf32>,
    %c0_27 = arith.constant 0 : index
    %c0_28 = arith.constant 0 : index
    %c1_29 = arith.constant 1 : index
    %c0_30 = arith.constant 0 : index
    %42 = tpu.strided_load %arg7[%c0_27, %c0_28, %c1_29, %c0_30] {strides = array<i32: 1, 2, 2, 1>} : memref<2x9x8x16xf32, #tpu.memory_space<vmem>>, vector<2x4x4x16xf32>
    %c1_i32 = arith.constant 1 : i32
    %43 = tpu.dynamic_rotate %42 by %c1_i32 dim 2 : vector<2x4x4x16xf32>, i32 -> vector<2x4x4x16xf32>
    %44 = tpu.iota {dimensions = array<i32: 2>} : vector<2x4x4x16xi32>
    %c0_i32 = arith.constant 0 : i32
    %45 = vector.broadcast %c0_i32 : i32 to vector<2x4x4x16xi32>
    %46 = arith.cmpi eq, %44, %45 : vector<2x4x4x16xi32>
    %cst_31 = arith.constant 0.000000e+00 : f32
    %47 = vector.broadcast %cst_31 : f32 to vector<2x4x4x16xf32>
    %48 = arith.select %46, %47, %43 : vector<2x4x4x16xi1>, vector<2x4x4x16xf32>
    %49 = vector.shape_cast %48 : vector<2x4x4x16xf32> to vector<32x16xf32>
    %c0_32 = arith.constant 0 : index
    %c0_33 = arith.constant 0 : index
    %c0_34 = arith.constant 0 : index
    %c0_35 = arith.constant 0 : index
    %50 = tpu.strided_load %arg7[%c0_32, %c0_33, %c0_34, %c0_35] {strides = array<i32: 1, 2, 2, 1>} : memref<2x9x8x16xf32, #tpu.memory_space<vmem>>, vector<2x4x4x16xf32>
    %51 = vector.shape_cast %50 : vector<2x4x4x16xf32> to vector<32x16xf32>
    %c0_36 = arith.constant 0 : index
    %c0_37 = arith.constant 0 : index
    %c1_38 = arith.constant 1 : index
    %c0_39 = arith.constant 0 : index
    %52 = tpu.strided_load %arg7[%c0_36, %c0_37, %c1_38, %c0_39] {strides = array<i32: 1, 2, 2, 1>} : memref<2x9x8x16xf32, #tpu.memory_space<vmem>>, vector<2x4x4x16xf32>
    %53 = vector.shape_cast %52 : vector<2x4x4x16xf32> to vector<32x16xf32>
    %c0_40 = arith.constant 0 : index
    %c1_41 = arith.constant 1 : index
    %c1_42 = arith.constant 1 : index
    %c0_43 = arith.constant 0 : index
    %54 = tpu.strided_load %arg7[%c0_40, %c1_41, %c1_42, %c0_43] {strides = array<i32: 1, 2, 2, 1>} : memref<2x9x8x16xf32, #tpu.memory_space<vmem>>, vector<2x4x4x16xf32>
    %c1_i32_44 = arith.constant 1 : i32
    %55 = tpu.dynamic_rotate %54 by %c1_i32_44 dim 2 : vector<2x4x4x16xf32>, i32 -> vector<2x4x4x16xf32>
    %56 = tpu.iota {dimensions = array<i32: 2>} : vector<2x4x4x16xi32>
    %c0_i32_45 = arith.constant 0 : i32
    %57 = vector.broadcast %c0_i32_45 : i32 to vector<2x4x4x16xi32>
    %58 = arith.cmpi eq, %56, %57 : vector<2x4x4x16xi32>
    %cst_46 = arith.constant 0.000000e+00 : f32
    %59 = vector.broadcast %cst_46 : f32 to vector<2x4x4x16xf32>
    %60 = arith.select %58, %59, %55 : vector<2x4x4x16xi1>, vector<2x4x4x16xf32>
    %61 = vector.shape_cast %60 : vector<2x4x4x16xf32> to vector<32x16xf32>
    %c0_47 = arith.constant 0 : index
    %c1_48 = arith.constant 1 : index
    %c0_49 = arith.constant 0 : index
    %c0_50 = arith.constant 0 : index
    %62 = tpu.strided_load %arg7[%c0_47, %c1_48, %c0_49, %c0_50] {strides = array<i32: 1, 2, 2, 1>} : memref<2x9x8x16xf32, #tpu.memory_space<vmem>>, vector<2x4x4x16xf32>
    %63 = vector.shape_cast %62 : vector<2x4x4x16xf32> to vector<32x16xf32>
    %c0_51 = arith.constant 0 : index
    %c1_52 = arith.constant 1 : index
    %c1_53 = arith.constant 1 : index
    %c0_54 = arith.constant 0 : index
    %64 = tpu.strided_load %arg7[%c0_51, %c1_52, %c1_53, %c0_54] {strides = array<i32: 1, 2, 2, 1>} : memref<2x9x8x16xf32, #tpu.memory_space<vmem>>, vector<2x4x4x16xf32>
    %65 = vector.shape_cast %64 : vector<2x4x4x16xf32> to vector<32x16xf32>
    %c0_55 = arith.constant 0 : index
    %c2_56 = arith.constant 2 : index
    %c1_57 = arith.constant 1 : index
    %c0_58 = arith.constant 0 : index
    %66 = tpu.strided_load %arg7[%c0_55, %c2_56, %c1_57, %c0_58] {strides = array<i32: 1, 2, 2, 1>} : memref<2x9x8x16xf32, #tpu.memory_space<vmem>>, vector<2x4x4x16xf32>
    %c1_i32_59 = arith.constant 1 : i32
    %67 = tpu.dynamic_rotate %66 by %c1_i32_59 dim 2 : vector<2x4x4x16xf32>, i32 -> vector<2x4x4x16xf32>
    %68 = tpu.iota {dimensions = array<i32: 2>} : vector<2x4x4x16xi32>
    %c0_i32_60 = arith.constant 0 : i32
    %69 = vector.broadcast %c0_i32_60 : i32 to vector<2x4x4x16xi32>
    %70 = arith.cmpi eq, %68, %69 : vector<2x4x4x16xi32>
    %cst_61 = arith.constant 0.000000e+00 : f32
    %71 = vector.broadcast %cst_61 : f32 to vector<2x4x4x16xf32>
    %72 = arith.select %70, %71, %67 : vector<2x4x4x16xi1>, vector<2x4x4x16xf32>
    %73 = vector.shape_cast %72 : vector<2x4x4x16xf32> to vector<32x16xf32>
    %c0_62 = arith.constant 0 : index
    %c2_63 = arith.constant 2 : index
    %c0_64 = arith.constant 0 : index
    %c0_65 = arith.constant 0 : index
    %74 = tpu.strided_load %arg7[%c0_62, %c2_63, %c0_64, %c0_65] {strides = array<i32: 1, 2, 2, 1>} : memref<2x9x8x16xf32, #tpu.memory_space<vmem>>, vector<2x4x4x16xf32>
    %75 = vector.shape_cast %74 : vector<2x4x4x16xf32> to vector<32x16xf32>
    %c0_66 = arith.constant 0 : index
    %c2_67 = arith.constant 2 : index
    %c1_68 = arith.constant 1 : index
    %c0_69 = arith.constant 0 : index
    %76 = tpu.strided_load %arg7[%c0_66, %c2_67, %c1_68, %c0_69] {strides = array<i32: 1, 2, 2, 1>} : memref<2x9x8x16xf32, #tpu.memory_space<vmem>>, vector<2x4x4x16xf32>
    %77 = vector.shape_cast %76 : vector<2x4x4x16xf32> to vector<32x16xf32>
    %78 = tpu.concatenate %49, %51, %53, %61, %63, %65, %73, %75, %77 in 1 : vector<32x16xf32>, vector<32x16xf32>, vector<32x16xf32>, vector<32x16xf32>, vector<32x16xf32>, vector<32x16xf32>, vector<32x16xf32>, vector<32x16xf32>, vector<32x16xf32> -> vector<32x144xf32>
    %79 = arith.truncf %78 : vector<32x144xf32> to vector<32x144xbf16>
    %c0_70 = arith.constant 0 : index
    %c0_71 = arith.constant 0 : index
    %80 = vector.load %arg3[%c0_70, %c0_71] : memref<144x16xbf16, #tpu.memory_space<vmem>>, vector<144x16xbf16>
    %cst_72 = arith.constant dense<0.000000e+00> : vector<32x16xf32>
    %81 = tpu.matmul %79, %80, %cst_72 {dimension_numbers = #tpu.dot_dimension_numbers<[1], [0], [0], [1], [0, 0, 1, 1], [], []>} : vector<32x144xbf16>, vector<144x16xbf16>, vector<32x16xf32> -> vector<32x16xf32>
    %cst_73 = arith.constant dense<0.000000e+00> : vector<16xf32>
    %82 = vector.multi_reduction <add>, %81, %cst_73 [0] : vector<32x16xf32> to vector<16xf32>
    %83 = vector.shape_cast %82 : vector<16xf32> to vector<1x16xf32>
    %cst_74 = arith.constant 3.200000e+01 : f32
    %84 = vector.broadcast %cst_74 : f32 to vector<1x16xf32>
    %85 = arith.divf %83, %84 : vector<1x16xf32>
    %86 = arith.mulf %81, %81 : vector<32x16xf32>
    %cst_75 = arith.constant dense<0.000000e+00> : vector<16xf32>
    %87 = vector.multi_reduction <add>, %86, %cst_75 [0] : vector<32x16xf32> to vector<16xf32>
    %88 = vector.shape_cast %87 : vector<16xf32> to vector<1x16xf32>
    %cst_76 = arith.constant 3.200000e+01 : f32
    %89 = vector.broadcast %cst_76 : f32 to vector<1x16xf32>
    %90 = arith.divf %88, %89 : vector<1x16xf32>
    %91 = arith.mulf %85, %85 : vector<1x16xf32>
    %92 = arith.subf %90, %91 : vector<1x16xf32>
    %cst_77 = arith.constant 0.000000e+00 : f32
    %93 = vector.broadcast %cst_77 : f32 to vector<1x16xf32>
    %94 = arith.maximumf %92, %93 : vector<1x16xf32>
    %cst_78 = arith.constant 9.99999974E-6 : f32
    %95 = vector.broadcast %cst_78 : f32 to vector<1x16xf32>
    %96 = arith.addf %94, %95 : vector<1x16xf32>
    %97 = math.rsqrt %96 : vector<1x16xf32>
    %98 = arith.mulf %2, %97 : vector<1x16xf32>
    %99 = arith.mulf %85, %98 : vector<1x16xf32>
    %100 = arith.subf %3, %99 : vector<1x16xf32>
    %101 = vector.broadcast %98 : vector<1x16xf32> to vector<32x16xf32>
    %102 = arith.mulf %81, %101 : vector<32x16xf32>
    %103 = vector.broadcast %100 : vector<1x16xf32> to vector<32x16xf32>
    %104 = arith.addf %102, %103 : vector<32x16xf32>
    %cst_79 = arith.constant 0.000000e+00 : f32
    %105 = vector.broadcast %cst_79 : f32 to vector<32x16xf32>
    %106 = arith.cmpf ogt, %104, %105 : vector<32x16xf32>
    %107 = math.exp %104 : vector<32x16xf32>
    %cst_80 = arith.constant 1.000000e+00 : f32
    %108 = vector.broadcast %cst_80 : f32 to vector<32x16xf32>
    %109 = arith.subf %107, %108 : vector<32x16xf32>
    %110 = arith.select %106, %104, %109 : vector<32x16xi1>, vector<32x16xf32>
    %111 = vector.shape_cast %110 : vector<32x16xf32> to vector<2x16x16xf32>
    %cst_81 = arith.constant dense<0.000000e+00> : vector<2x16xf32>
    %112 = vector.multi_reduction <add>, %111, %cst_81 [1] : vector<2x16x16xf32> to vector<2x16xf32>
    %cst_82 = arith.constant 1.600000e+01 : f32
    %113 = vector.broadcast %cst_82 : f32 to vector<2x16xf32>
    %114 = arith.divf %112, %113 : vector<2x16xf32>
    %c0_83 = arith.constant 0 : index
    %c0_84 = arith.constant 0 : index
    %115 = vector.load %arg5[%c0_83, %c0_84] : memref<32x16xf32, #tpu.memory_space<vmem>>, vector<16x16xf32>
    %c16 = arith.constant 16 : index
    %c0_85 = arith.constant 0 : index
    %116 = vector.load %arg5[%c16, %c0_85] : memref<32x16xf32, #tpu.memory_space<vmem>>, vector<16x16xf32>
    %cst_86 = arith.constant dense<0.000000e+00> : vector<2x16xf32>
    %117 = tpu.matmul %114, %115, %cst_86 {dimension_numbers = #tpu.dot_dimension_numbers<[1], [0], [0], [1], [0, 0, 1, 1], [], []>} : vector<2x16xf32>, vector<16x16xf32>, vector<2x16xf32> -> vector<2x16xf32>
    %118 = vector.broadcast %4 : vector<1x16xf32> to vector<2x16xf32>
    %119 = arith.addf %117, %118 : vector<2x16xf32>
    %cst_87 = arith.constant 0.000000e+00 : f32
    %120 = vector.broadcast %cst_87 : f32 to vector<2x16xf32>
    %121 = arith.maximumf %119, %120 : vector<2x16xf32>
    %cst_88 = arith.constant dense<0.000000e+00> : vector<2x16xf32>
    %122 = tpu.matmul %121, %116, %cst_88 {dimension_numbers = #tpu.dot_dimension_numbers<[1], [0], [0], [1], [0, 0, 1, 1], [], []>} : vector<2x16xf32>, vector<16x16xf32>, vector<2x16xf32> -> vector<2x16xf32>
    %123 = vector.broadcast %5 : vector<1x16xf32> to vector<2x16xf32>
    %124 = arith.addf %122, %123 : vector<2x16xf32>
    %125 = arith.negf %124 : vector<2x16xf32>
    %126 = math.exp %125 : vector<2x16xf32>
    %cst_89 = arith.constant 1.000000e+00 : f32
    %127 = vector.broadcast %cst_89 : f32 to vector<2x16xf32>
    %128 = arith.addf %127, %126 : vector<2x16xf32>
    %129 = arith.divf %127, %128 : vector<2x16xf32>
    %130 = vector.shape_cast %110 : vector<32x16xf32> to vector<2x4x4x16xf32>
    %131 = vector.shape_cast %129 : vector<2x16xf32> to vector<2x1x1x16xf32>
    %132 = vector.broadcast %131 : vector<2x1x1x16xf32> to vector<2x4x4x16xf32>
    %133 = arith.mulf %130, %132 : vector<2x4x4x16xf32>
    %c0_90 = arith.constant 0 : index
    %c0_91 = arith.constant 0 : index
    %c0_92 = arith.constant 0 : index
    %c0_93 = arith.constant 0 : index
    %134 = vector.load %arg6[%c0_90, %c0_91, %c0_92, %c0_93] : memref<2x4x4x16xf32, #tpu.memory_space<vmem>>, vector<2x4x4x16xf32>
    tpu.vector_store %arg6[%c0_90, %c0_91, %c0_92, %c0_93], %133 {strides = array<i32>} : memref<2x4x4x16xf32, #tpu.memory_space<vmem>>, vector<2x4x4x16xf32>,
    return
  }
  func.func @transform_0(%arg0: i32) -> (i32, i32) {
    %c0_i32 = arith.constant 0 : i32
    %c0_i32_0 = arith.constant 0 : i32
    %c0_i32_1 = arith.constant 0 : i32
    return %c0_i32, %c0_i32_0 : i32, i32
  }
  func.func @transform_1(%arg0: i32) -> (i32, i32) {
    %c0_i32 = arith.constant 0 : i32
    %c0_i32_0 = arith.constant 0 : i32
    %c0_i32_1 = arith.constant 0 : i32
    return %c0_i32, %c0_i32_0 : i32, i32
  }
  func.func @transform_2(%arg0: i32) -> (i32, i32) {
    %c0_i32 = arith.constant 0 : i32
    %c0_i32_0 = arith.constant 0 : i32
    %c0_i32_1 = arith.constant 0 : i32
    return %c0_i32, %c0_i32_0 : i32, i32
  }
  func.func @transform_3(%arg0: i32) -> (i32, i32) {
    %c0_i32 = arith.constant 0 : i32
    %c0_i32_0 = arith.constant 0 : i32
    %c0_i32_1 = arith.constant 0 : i32
    return %c0_i32, %c0_i32_0 : i32, i32
  }
  func.func @transform_4(%arg0: i32) -> (i32, i32) {
    %c0_i32 = arith.constant 0 : i32
    %c0_i32_0 = arith.constant 0 : i32
    %c0_i32_1 = arith.constant 0 : i32
    return %c0_i32, %c0_i32_0 : i32, i32
  }
  func.func @transform_5(%arg0: i32) -> (i32, i32, i32, i32) {
    %c0_i32 = arith.constant 0 : i32
    %c0_i32_0 = arith.constant 0 : i32
    %c0_i32_1 = arith.constant 0 : i32
    %c0_i32_2 = arith.constant 0 : i32
    %c0_i32_3 = arith.constant 0 : i32
    return %c0_i32, %c0_i32_0, %c0_i32_1, %c0_i32_2 : i32, i32, i32, i32
  }
}

</mosaic_0001>

<llo_original>
// kernel: double_conv_forward.1
$region0: #{double_conv_forward.1}
  #allocation0 [shape = 'u32[]', space=smem, size = 0x4, offset = 0x4, fixed_abs, tag = 'smem constant byte address 0x4 - core index']
  #allocation1 [shape = 'u32[144,128]{1,0:T(1,128)}', space=vmem, size = 0x12000, scoped, tag = 'internal scratch']
  #allocation2 [shape = 'f32[2,9,8,16]{3,2,1,0:T(8,128)}', space=vmem, size = 0x12000, scoped, tag = 'scratch operand']
  %s0 = inlined_call_operand.vmem [shape: bf16[128,36], index: 0, kind: input, shape index: {}]
  %s1 = inlined_call_operand.vmem [shape: bf16[36,16], index: 1, kind: input, shape index: {}]
  %s2 = inlined_call_operand.vmem [shape: bf16[144,16], index: 2, kind: input, shape index: {}]
  %s3 = inlined_call_operand.vmem [shape: f32[6,16], index: 3, kind: input, shape index: {}]
  %s4 = inlined_call_operand.vmem [shape: f32[32,16], index: 4, kind: input, shape index: {}]
  %s5 = inlined_call_operand.hbm [shape: f32[2,4,4,16], index: 5, kind: output, shape index: {}]
  %s6 = sld [smem:[#allocation0]]
  $region30: #{double_conv_forward.1} parent=0
    _
  %s8 = ssub.s32 1, %s6
  %s9 = scalar_select 0, %s8, %s6
  $region1: #{double_conv_forward.1} parent=0
    #allocation3 [shape = 'u8[16384]{0}', space=vmem, size = 0x4000, scoped, tag = 'output window, operand 0, single buffered']
    #allocation4 [shape = 's32[1]{0}', space=sflag, size = 0x4, scoped, tag = 'scoped memory for double_conv_forward.1']
    %10 = vsyncpa [#allocation4], 0
    // Predicated region
    $region2: #{double_conv_forward.1} parent=1 // pred_check
      _
    $region3: #{double_conv_forward.1} parent=1 // pred_check_branch
      %12 = sbr.rel (0) target = $region5
    $region4: #{double_conv_forward.1} parent=1 // pred_region
      _
    $region5: #{double_conv_forward.1} parent=1 // pred_fallthru
      _
    // Predicated region
    $region6: #{double_conv_forward.1} parent=1 // pred_check
      _
    $region7: #{double_conv_forward.1} parent=1 // pred_check_branch
      %14 = sbr.rel (0) target = $region9
    $region8: #{double_conv_forward.1} parent=1 // pred_region
      _
    $region9: #{double_conv_forward.1} parent=1 // pred_fallthru
      _
    // Predicated region
    $region10: #{double_conv_forward.1} parent=1 // pred_check
      _
    $region11: #{double_conv_forward.1} parent=1 // pred_check_branch
      %16 = sbr.rel (0) target = $region13
    $region12: #{double_conv_forward.1} parent=1 // pred_region
      _
    $region13: #{double_conv_forward.1} parent=1 // pred_fallthru
      _
    // Predicated region
    $region14: #{double_conv_forward.1} parent=1 // pred_check
      _
    $region15: #{double_conv_forward.1} parent=1 // pred_check_branch
      %18 = sbr.rel (0) target = $region17
    $region16: #{double_conv_forward.1} parent=1 // pred_region
      _
    $region17: #{double_conv_forward.1} parent=1 // pred_fallthru
      _
    // Predicated region
    $region18: #{double_conv_forward.1} parent=1 // pred_check
      _
    $region19: #{double_conv_forward.1} parent=1 // pred_check_branch
      %20 = sbr.rel (0) target = $region21
    $region20: #{double_conv_forward.1} parent=1 // pred_region
      _
    $region21: #{double_conv_forward.1} parent=1 // pred_fallthru
      _
    %v22 = vld [vmem:[%s3] sm:$0x1]
    %v23 = vld [vmem:[%s3 + $0x1] sm:$0x1]
    %v24 = vld [vmem:[%s3 + $0x2] sm:$0x1]
    %v25 = vld [vmem:[%s3 + $0x3] sm:$0x1]
    %v26 = vld [vmem:[%s3 + $0x4] sm:$0x1]
    %v27 = vld [vmem:[%s3 + $0x5] sm:$0x1]
    %v28 = vld [vmem:[%s0] sm:$0xf]
    %v29 = vld [vmem:[%s0 + $0x4] sm:$0xf]
    %v30 = vld [vmem:[%s0 + $0x8] sm:$0xf]
    %v31 = vld [vmem:[%s0 + $0xc] sm:$0xf]
    %v32 = vld [vmem:[%s0 + $0x10] sm:$0xf]
    %v33 = vld [vmem:[%s0 + $0x14] sm:$0xf]
    %v34 = vld [vmem:[%s0 + $0x18] sm:$0xf]
    %v35 = vld [vmem:[%s0 + $0x1c] sm:$0xf]
    %v36 = vld [vmem:[%s0 + $0x20] sm:$0xf]
    %v37 = vld [vmem:[%s0 + $0x24] sm:$0xf]
    %v38 = vld [vmem:[%s0 + $0x28] sm:$0xf]
    %v39 = vld [vmem:[%s0 + $0x2c] sm:$0xf]
    %v40 = vld [vmem:[%s0 + $0x30] sm:$0xf]
    %v41 = vld [vmem:[%s0 + $0x34] sm:$0xf]
    %v42 = vld [vmem:[%s0 + $0x38] sm:$0xf]
    %v43 = vld [vmem:[%s0 + $0x3c] sm:$0xf]
    %v44 = vld [vmem:[%s1] sm:$0xf]
    %v45 = vld [vmem:[%s1 + $0x4] sm:$0xf]
    %v46 = vld [vmem:[%s1 + $0x8] sm:$0xf]
    %v47 = vld [vmem:[%s1 + $0xc] sm:$0xf]
    %v48 = vld [vmem:[%s1 + $0x10] sm:$0x3]
    %v65 = vunpack.c.l.b16 %v28
    %v66 = vunpack.c.l.b16 %v29
    %v67 = vunpack.c.l.b16 %v30
    %v68 = vunpack.c.l.b16 %v31
    %v69 = vunpack.c.l.b16 %v32
    %v70 = vunpack.c.l.b16 %v33
    %v71 = vunpack.c.l.b16 %v34
    %v72 = vunpack.c.l.b16 %v35
    %v73 = vunpack.c.l.b16 %v36
    %v74 = vunpack.c.l.b16 %v37
    %v75 = vunpack.c.l.b16 %v38
    %v76 = vunpack.c.l.b16 %v39
    %v77 = vunpack.c.l.b16 %v40
    %v78 = vunpack.c.l.b16 %v41
    %v79 = vunpack.c.l.b16 %v42
    %v80 = vunpack.c.l.b16 %v43
    %v81 = vpack.c.b16 %v66, %v65
    %v82 = vpack.c.b16 %v68, %v67
    %v83 = vpack.c.b16 %v70, %v69
    %v84 = vpack.c.b16 %v72, %v71
    %v85 = vpack.c.b16 %v74, %v73
    %v86 = vpack.c.b16 %v76, %v75
    %v87 = vpack.c.b16 %v78, %v77
    %v88 = vpack.c.b16 %v80, %v79
    %v94 = vunpack.c.l.b16 %v44
    %v95 = vunpack.c.l.b16 %v45
    %v96 = vunpack.c.l.b16 %v46
    %v97 = vunpack.c.l.b16 %v47
    %v98 = vunpack.c.l.b16 %v48
    %v99 = vpack.c.b16 %v95, %v94
    %v100 = vpack.c.b16 %v97, %v96
    %v101 = vpack.c.b16 %v98, %v98
    %vm104 = vcmask 293888
    %v106 = vsel %vm104, %v81, 0
    %v109 = vsel %vm104, %v82, 0
    %v112 = vsel %vm104, %v83, 0
    %v115 = vsel %vm104, %v84, 0
    %v118 = vsel %vm104, %v85, 0
    %v121 = vsel %vm104, %v86, 0
    %v124 = vsel %vm104, %v87, 0
    %v127 = vsel %vm104, %v88, 0
    %vm129 = vcmask 1041408
    %v131 = vsel %vm129, %v101, 0
    %133 = vmatprep.subr.bf16.mxu0 0
    %134 = vmatpush1.bf16.msra.mxu0 %v99
    %135 = vmatprep.subr.bf16.mxu0 0
    %136 = vmatpush1.bf16.msra.mxu0 %v100
    %137 = vmatprep.subr.bf16.mxu0 0
    %138 = vmatpush1.bf16.msra.mxu0 %v131
    %139 = vmatprep.subr.bf16.mxu0 0
    %140 = vmatpush1.bf16.msra.mxu0 0
    %141 = vmatprep.subr.bf16.mxu0 0
    %142 = vmatpush1.bf16.msra.mxu0 0
    %143 = vmatprep.subr.bf16.mxu0 0
    %144 = vmatpush1.bf16.msra.mxu0 0
    %145 = vmatprep.subr.bf16.mxu0 0
    %146 = vmatpush1.bf16.msra.mxu0 0
    %147 = vmatprep.subr.bf16.mxu0 0
    %148 = vmatpush1.bf16.msra.mxu0 0
    %149 = vmatprep.subr.bf16.mxu0 0
    %150 = vmatpush1.bf16.msra.mxu0 0
    %151 = vmatprep.subr.bf16.mxu0 0
    %152 = vmatpush1.bf16.msra.mxu0 0
    %153 = vmatprep.subr.bf16.mxu0 0
    %154 = vmatpush1.bf16.msra.mxu0 0
    %155 = vmatprep.subr.bf16.mxu0 0
    %156 = vmatpush1.bf16.msra.mxu0 0
    %157 = vmatprep.subr.bf16.mxu0 0
    %158 = vmatpush1.bf16.msra.mxu0 0
    %159 = vmatprep.subr.bf16.mxu0 0
    %160 = vmatpush1.bf16.msra.mxu0 0
    %161 = vmatprep.subr.bf16.mxu0 0
    %162 = vmatpush1.bf16.msra.mxu0 0
    %163 = vmatprep.subr.bf16.mxu0 0
    %164 = vmatpush1.bf16.msra.mxu0 0
    %165 = vmatprep.mubr.bf16.mxu0 0
    %166 = vmatmul.mubr.bf16.gmra.mrb[0].mxu0 %v106
    %v167 = vpop.f32.mrb[0].mxu0
    %v168 = vadd.f32 0.0, %v167
    %v169 = vpop.f32.mrb[0].mxu0
    %v170 = vpop.f32.mrb[0].mxu0
    %v171 = vadd.f32 0.0, %v170
    %v172 = vpop.f32.mrb[0].mxu0
    %173 = vmatprep.mubr.bf16.mxu0 0
    %174 = vmatmul.mubr.bf16.gmra.mrb[0].mxu0 %v109
    %v175 = vpop.f32.mrb[0].mxu0
    %v176 = vadd.f32 0.0, %v175
    %v177 = vpop.f32.mrb[0].mxu0
    %v178 = vpop.f32.mrb[0].mxu0
    %v179 = vadd.f32 0.0, %v178
    %v180 = vpop.f32.mrb[0].mxu0
    %181 = vmatprep.mubr.bf16.mxu0 0
    %182 = vmatmul.mubr.bf16.gmra.mrb[0].mxu0 %v112
    %v183 = vpop.f32.mrb[0].mxu0
    %v184 = vadd.f32 0.0, %v183
    %v185 = vpop.f32.mrb[0].mxu0
    %v186 = vpop.f32.mrb[0].mxu0
    %v187 = vadd.f32 0.0, %v186
    %v188 = vpop.f32.mrb[0].mxu0
    %189 = vmatprep.mubr.bf16.mxu0 0
    %190 = vmatmul.mubr.bf16.gmra.mrb[0].mxu0 %v115
    %v191 = vpop.f32.mrb[0].mxu0
    %v192 = vadd.f32 0.0, %v191
    %v193 = vpop.f32.mrb[0].mxu0
    %v194 = vpop.f32.mrb[0].mxu0
    %v195 = vadd.f32 0.0, %v194
    %v196 = vpop.f32.mrb[0].mxu0
    %197 = vmatprep.mubr.bf16.mxu0 0
    %198 = vmatmul.mubr.bf16.gmra.mrb[0].mxu0 %v118
    %v199 = vpop.f32.mrb[0].mxu0
    %v200 = vadd.f32 0.0, %v199
    %v201 = vpop.f32.mrb[0].mxu0
    %v202 = vpop.f32.mrb[0].mxu0
    %v203 = vadd.f32 0.0, %v202
    %v204 = vpop.f32.mrb[0].mxu0
    %205 = vmatprep.mubr.bf16.mxu0 0
    %206 = vmatmul.mubr.bf16.gmra.mrb[0].mxu0 %v121
    %v207 = vpop.f32.mrb[0].mxu0
    %v208 = vadd.f32 0.0, %v207
    %v209 = vpop.f32.mrb[0].mxu0
    %v210 = vpop.f32.mrb[0].mxu0
    %v211 = vadd.f32 0.0, %v210
    %v212 = vpop.f32.mrb[0].mxu0
    %213 = vmatprep.mubr.bf16.mxu0 0
    %214 = vmatmul.mubr.bf16.gmra.mrb[0].mxu0 %v124
    %v215 = vpop.f32.mrb[0].mxu0
    %v216 = vadd.f32 0.0, %v215
    %v217 = vpop.f32.mrb[0].mxu0
    %v218 = vpop.f32.mrb[0].mxu0
    %v219 = vadd.f32 0.0, %v218
    %v220 = vpop.f32.mrb[0].mxu0
    %221 = vmatprep.mubr.bf16.mxu0 0
    %222 = vmatmul.mubr.bf16.gmra.mrb[0].mxu0 %v127
    %v223 = vpop.f32.mrb[0].mxu0
    %v224 = vadd.f32 0.0, %v223
    %v225 = vpop.f32.mrb[0].mxu0
    %v226 = vpop.f32.mrb[0].mxu0
    %v227 = vadd.f32 0.0, %v226
    %v228 = vpop.f32.mrb[0].mxu0
    %229 = vdwg.mxu0
    %vm230 = vcmask 130048
    %v231 = vsel %vm230, %v168, 0.0
    %v232 = vsel %vm230, %v171, 0.0
    %v233 = vadd.f32 %v231, %v232
    %v234 = vsel %vm230, %v176, 0.0
    %v235 = vadd.f32 %v233, %v234
    %v236 = vsel %vm230, %v179, 0.0
    %v237 = vadd.f32 %v235, %v236
    %v238 = vsel %vm230, %v184, 0.0
    %v239 = vadd.f32 %v237, %v238
    %v240 = vsel %vm230, %v187, 0.0
    %v241 = vadd.f32 %v239, %v240
    %v242 = vsel %vm230, %v192, 0.0
    %v243 = vadd.f32 %v241, %v242
    %v244 = vsel %vm230, %v195, 0.0
    %v245 = vadd.f32 %v243, %v244
    %v246 = vsel %vm230, %v200, 0.0
    %v247 = vadd.f32 %v245, %v246
    %v248 = vsel %vm230, %v203, 0.0
    %v249 = vadd.f32 %v247, %v248
    %v250 = vsel %vm230, %v208, 0.0
    %v251 = vadd.f32 %v249, %v250
    %v252 = vsel %vm230, %v211, 0.0
    %v253 = vadd.f32 %v251, %v252
    %v254 = vsel %vm230, %v216, 0.0
    %v255 = vadd.f32 %v253, %v254
    %v256 = vsel %vm230, %v219, 0.0
    %v257 = vadd.f32 %v255, %v256
    %v258 = vsel %vm230, %v224, 0.0
    %v259 = vadd.f32 %v257, %v258
    %v260 = vsel %vm230, %v227, 0.0
    %v261 = vadd.f32 %v259, %v260
    %v262 = vrot.slane %v261, 4
    %v263 = vadd.f32 %v261, %v262
    %v264 = vrot.slane %v263, 2
    %v265 = vadd.f32 %v263, %v264
    %v266 = vrot.slane %v265, 1
    %v267 = vadd.f32 %v265, %v266
    %v268 = vrcp.pop 128.0
    %v269 = vmul.f32 %v267, %v268
    %v270 = vmul.f32 %v168, %v168
    %v271 = vmul.f32 %v171, %v171
    %v272 = vmul.f32 %v176, %v176
    %v273 = vmul.f32 %v179, %v179
    %v274 = vmul.f32 %v184, %v184
    %v275 = vmul.f32 %v187, %v187
    %v276 = vmul.f32 %v192, %v192
    %v277 = vmul.f32 %v195, %v195
    %v278 = vmul.f32 %v200, %v200
    %v279 = vmul.f32 %v203, %v203
    %v280 = vmul.f32 %v208, %v208
    %v281 = vmul.f32 %v211, %v211
    %v282 = vmul.f32 %v216, %v216
    %v283 = vmul.f32 %v219, %v219
    %v284 = vmul.f32 %v224, %v224
    %v285 = vmul.f32 %v227, %v227
    %v286 = vsel %vm230, %v270, 0.0
    %v287 = vsel %vm230, %v271, 0.0
    %v288 = vadd.f32 %v286, %v287
    %v289 = vsel %vm230, %v272, 0.0
    %v290 = vadd.f32 %v288, %v289
    %v291 = vsel %vm230, %v273, 0.0
    %v292 = vadd.f32 %v290, %v291
    %v293 = vsel %vm230, %v274, 0.0
    %v294 = vadd.f32 %v292, %v293
    %v295 = vsel %vm230, %v275, 0.0
    %v296 = vadd.f32 %v294, %v295
    %v297 = vsel %vm230, %v276, 0.0
    %v298 = vadd.f32 %v296, %v297
    %v299 = vsel %vm230, %v277, 0.0
    %v300 = vadd.f32 %v298, %v299
    %v301 = vsel %vm230, %v278, 0.0
    %v302 = vadd.f32 %v300, %v301
    %v303 = vsel %vm230, %v279, 0.0
    %v304 = vadd.f32 %v302, %v303
    %v305 = vsel %vm230, %v280, 0.0
    %v306 = vadd.f32 %v304, %v305
    %v307 = vsel %vm230, %v281, 0.0
    %v308 = vadd.f32 %v306, %v307
    %v309 = vsel %vm230, %v282, 0.0
    %v310 = vadd.f32 %v308, %v309
    %v311 = vsel %vm230, %v283, 0.0
    %v312 = vadd.f32 %v310, %v311
    %v313 = vsel %vm230, %v284, 0.0
    %v314 = vadd.f32 %v312, %v313
    %v315 = vsel %vm230, %v285, 0.0
    %v316 = vadd.f32 %v314, %v315
    %v317 = vrot.slane %v316, 4
    %v318 = vadd.f32 %v316, %v317
    %v319 = vrot.slane %v318, 2
    %v320 = vadd.f32 %v318, %v319
    %v321 = vrot.slane %v320, 1
    %v322 = vadd.f32 %v320, %v321
    %v323 = vmul.f32 %v322, %v268
    %v324 = vmul.f32 %v269, %v269
    %v325 = vsub.f32 %v323, %v324
    %v326 = vmax.f32 %v325, 0.0
    %v327 = vadd.f32 %v326, 1e-05
    %v328 = vrsqrt.pop %v327
    %v329 = vmul.f32 %v22, %v328
    %v330 = vmul.f32 %v269, %v329
    %v331 = vsub.f32 %v23, %v330
    %v332 = vlaneseq
    %v333 = vshrl.u32 %v332, 7
    %v334 = vsub.s32 0, %v333
    %v335 = vrot.slane %v329, %v334
    %v336 = vmul.f32 %v168, %v335
    %v337 = vmul.f32 %v171, %v335
    %v338 = vmul.f32 %v176, %v335
    %v339 = vmul.f32 %v179, %v335
    %v340 = vmul.f32 %v184, %v335
    %v341 = vmul.f32 %v187, %v335
    %v342 = vmul.f32 %v192, %v335
    %v343 = vmul.f32 %v195, %v335
    %v344 = vmul.f32 %v200, %v335
    %v345 = vmul.f32 %v203, %v335
    %v346 = vmul.f32 %v208, %v335
    %v347 = vmul.f32 %v211, %v335
    %v348 = vmul.f32 %v216, %v335
    %v349 = vmul.f32 %v219, %v335
    %v350 = vmul.f32 %v224, %v335
    %v351 = vmul.f32 %v227, %v335
    %v352 = vlaneseq
    %v353 = vshrl.u32 %v352, 7
    %v354 = vsub.s32 0, %v353
    %v355 = vrot.slane %v331, %v354
    %v356 = vadd.f32 %v336, %v355
    %v357 = vadd.f32 %v337, %v355
    %v358 = vadd.f32 %v338, %v355
    %v359 = vadd.f32 %v339, %v355
    %v360 = vadd.f32 %v340, %v355
    %v361 = vadd.f32 %v341, %v355
    %v362 = vadd.f32 %v342, %v355
    %v363 = vadd.f32 %v343, %v355
    %v364 = vadd.f32 %v344, %v355
    %v365 = vadd.f32 %v345, %v355
    %v366 = vadd.f32 %v346, %v355
    %v367 = vadd.f32 %v347, %v355
    %v368 = vadd.f32 %v348, %v355
    %v369 = vadd.f32 %v349, %v355
    %v370 = vadd.f32 %v350, %v355
    %v371 = vadd.f32 %v351, %v355
    %vm372 = vcmp.gt.f32.partialorder %v356, 0.0
    %vm373 = vcmp.gt.f32.partialorder %v357, 0.0
    %vm374 = vcmp.gt.f32.partialorder %v358, 0.0
    %vm375 = vcmp.gt.f32.partialorder %v359, 0.0
    %vm376 = vcmp.gt.f32.partialorder %v360, 0.0
    %vm377 = vcmp.gt.f32.partialorder %v361, 0.0
    %vm378 = vcmp.gt.f32.partialorder %v362, 0.0
    %vm379 = vcmp.gt.f32.partialorder %v363, 0.0
    %vm380 = vcmp.gt.f32.partialorder %v364, 0.0
    %vm381 = vcmp.gt.f32.partialorder %v365, 0.0
    %vm382 = vcmp.gt.f32.partialorder %v366, 0.0
    %vm383 = vcmp.gt.f32.partialorder %v367, 0.0
    %vm384 = vcmp.gt.f32.partialorder %v368, 0.0
    %vm385 = vcmp.gt.f32.partialorder %v369, 0.0
    %vm386 = vcmp.gt.f32.partialorder %v370, 0.0
    %vm387 = vcmp.gt.f32.partialorder %v371, 0.0
    %v388 = vmul.f32 %v356, 1.442695
    %v389 = vpow.pop %v388
    %v390 = vmul.f32 %v357, 1.442695
    %v391 = vpow.pop %v390
    %v392 = vmul.f32 %v358, 1.442695
    %v393 = vpow.pop %v392
    %v394 = vmul.f32 %v359, 1.442695
    %v395 = vpow.pop %v394
    %v396 = vmul.f32 %v360, 1.442695
    %v397 = vpow.pop %v396
    %v398 = vmul.f32 %v361, 1.442695
    %v399 = vpow.pop %v398
    %v400 = vmul.f32 %v362, 1.442695
    %v401 = vpow.pop %v400
    %v402 = vmul.f32 %v363, 1.442695
    %v403 = vpow.pop %v402
    %v404 = vmul.f32 %v364, 1.442695
    %v405 = vpow.pop %v404
    %v406 = vmul.f32 %v365, 1.442695
    %v407 = vpow.pop %v406
    %v408 = vmul.f32 %v366, 1.442695
    %v409 = vpow.pop %v408
    %v410 = vmul.f32 %v367, 1.442695
    %v411 = vpow.pop %v410
    %v412 = vmul.f32 %v368, 1.442695
    %v413 = vpow.pop %v412
    %v414 = vmul.f32 %v369, 1.442695
    %v415 = vpow.pop %v414
    %v416 = vmul.f32 %v370, 1.442695
    %v417 = vpow.pop %v416
    %v418 = vmul.f32 %v371, 1.442695
    %v419 = vpow.pop %v418
    %v420 = vsub.f32 %v389, 1.0
    %v421 = vsub.f32 %v391, 1.0
    %v422 = vsub.f32 %v393, 1.0
    %v423 = vsub.f32 %v395, 1.0
    %v424 = vsub.f32 %v397, 1.0
    %v425 = vsub.f32 %v399, 1.0
    %v426 = vsub.f32 %v401, 1.0
    %v427 = vsub.f32 %v403, 1.0
    %v428 = vsub.f32 %v405, 1.0
    %v429 = vsub.f32 %v407, 1.0
    %v430 = vsub.f32 %v409, 1.0
    %v431 = vsub.f32 %v411, 1.0
    %v432 = vsub.f32 %v413, 1.0
    %v433 = vsub.f32 %v415, 1.0
    %v434 = vsub.f32 %v417, 1.0
    %v435 = vsub.f32 %v419, 1.0
    %v436 = vsel %vm372, %v356, %v420
    %v437 = vsel %vm373, %v357, %v421
    %v438 = vsel %vm374, %v358, %v422
    %v439 = vsel %vm375, %v359, %v423
    %v440 = vsel %vm376, %v360, %v424
    %v441 = vsel %vm377, %v361, %v425
    %v442 = vsel %vm378, %v362, %v426
    %v443 = vsel %vm379, %v363, %v427
    %v444 = vsel %vm380, %v364, %v428
    %v445 = vsel %vm381, %v365, %v429
    %v446 = vsel %vm382, %v366, %v430
    %v447 = vsel %vm383, %v367, %v431
    %v448 = vsel %vm384, %v368, %v432
    %v449 = vsel %vm385, %v369, %v433
    %v450 = vsel %vm386, %v370, %v434
    %v451 = vsel %vm387, %v371, %v435
    %452 = vst.msk [vmem:[#allocation2] sm:$0xff] %vm230, 0.0
    %453 = vst.msk [vmem:[#allocation2 + $0x48] sm:$0xff] %vm230, 0.0
    %s454 = scalar_lea.vmem [#allocation2], 8
    %455 = vst.msk [vmem:[%s454] sm:$0xff] %vm230, %v436
    %456 = vst.msk [vmem:[%s454 + $0x8] sm:$0xff] %vm230, %v437
    %457 = vst.msk [vmem:[%s454 + $0x10] sm:$0xff] %vm230, %v438
    %458 = vst.msk [vmem:[%s454 + $0x18] sm:$0xff] %vm230, %v439
    %459 = vst.msk [vmem:[%s454 + $0x20] sm:$0xff] %vm230, %v440
    %460 = vst.msk [vmem:[%s454 + $0x28] sm:$0xff] %vm230, %v441
    %461 = vst.msk [vmem:[%s454 + $0x30] sm:$0xff] %vm230, %v442
    %462 = vst.msk [vmem:[%s454 + $0x38] sm:$0xff] %vm230, %v443
    %463 = vst.msk [vmem:[%s454 + $0x48] sm:$0xff] %vm230, %v444
    %464 = vst.msk [vmem:[%s454 + $0x50] sm:$0xff] %vm230, %v445
    %465 = vst.msk [vmem:[%s454 + $0x58] sm:$0xff] %vm230, %v446
    %466 = vst.msk [vmem:[%s454 + $0x60] sm:$0xff] %vm230, %v447
    %467 = vst.msk [vmem:[%s454 + $0x68] sm:$0xff] %vm230, %v448
    %468 = vst.msk [vmem:[%s454 + $0x70] sm:$0xff] %vm230, %v449
    %469 = vst.msk [vmem:[%s454 + $0x78] sm:$0xff] %vm230, %v450
    %470 = vst.msk [vmem:[%s454 + $0x80] sm:$0xff] %vm230, %v451
    %s471 = scalar_lea.vmem [#allocation2], 1
    %v472 = vld [vmem:[%s471] ss:$2 sm:$0xf]
    %s473 = scalar_lea.vmem [#allocation2], 17
    %v474 = vld [vmem:[%s473] ss:$2 sm:$0xf]
    %s475 = scalar_lea.vmem [#allocation2], 33
    %v476 = vld [vmem:[%s475] ss:$2 sm:$0xf]
    %s477 = scalar_lea.vmem [#allocation2], 49
    %v478 = vld [vmem:[%s477] ss:$2 sm:$0xf]
    %s479 = scalar_lea.vmem [#allocation2], 73
    %v480 = vld [vmem:[%s479] ss:$2 sm:$0xf]
    %s481 = scalar_lea.vmem [#allocation2], 89
    %v482 = vld [vmem:[%s481] ss:$2 sm:$0xf]
    %s483 = scalar_lea.vmem [#allocation2], 105
    %v484 = vld [vmem:[%s483] ss:$2 sm:$0xf]
    %s485 = scalar_lea.vmem [#allocation2], 121
    %v486 = vld [vmem:[%s485] ss:$2 sm:$0xf]
    %vm487 = vcmask 1047556
    %v488 = vrot.slane %v472, 4
    %v489 = vsel %vm487, %v488, %v472
    %v490 = vrot.slane %v474, 4
    %v491 = vsel %vm487, %v490, %v474
    %v492 = vrot.slane %v476, 4
    %v493 = vsel %vm487, %v492, %v476
    %v494 = vrot.slane %v478, 4
    %v495 = vsel %vm487, %v494, %v478
    %v496 = vrot.slane %v480, 4
    %v497 = vsel %vm487, %v496, %v480
    %v498 = vrot.slane %v482, 4
    %v499 = vsel %vm487, %v498, %v482
    %v500 = vrot.slane %v484, 4
    %v501 = vsel %vm487, %v500, %v484
    %v502 = vrot.slane %v486, 4
    %v503 = vsel %vm487, %v502, %v486
    %v504 = vrot.slane %v489, 4
    %v505 = vrot.slane %v491, 4
    %v506 = vrot.slane %v493, 4
    %v507 = vrot.slane %v495, 4
    %v508 = vrot.slane %v497, 4
    %v509 = vrot.slane %v499, 4
    %v510 = vrot.slane %v501, 4
    %v511 = vrot.slane %v503, 4
    %v512 = vsel %vm487, %v504, %v472
    %v513 = vsel %vm487, %v505, %v474
    %v514 = vsel %vm487, %v506, %v476
    %v515 = vsel %vm487, %v507, %v478
    %v516 = vsel %vm487, %v508, %v480
    %v517 = vsel %vm487, %v509, %v482
    %v518 = vsel %vm487, %v510, %v484
    %v519 = vsel %vm487, %v511, %v486
    %v520 = vlaneseq
    %v521 = vshrl.u32 %v520, 7
    %vm522 = vcmp.eq.s32.totalorder %v521, 0
    %v531 = vrot.slane %v512, 3
    %v532 = vrot.slane %v513, 3
    %v533 = vrot.slane %v514, 3
    %v534 = vrot.slane %v515, 3
    %v535 = vrot.slane %v516, 3
    %v536 = vrot.slane %v517, 3
    %v537 = vrot.slane %v518, 3
    %v538 = vrot.slane %v519, 3
    %v547 = vsel %vm522, 0.0, %v531
    %v548 = vsel %vm522, 0.0, %v532
    %v549 = vsel %vm522, 0.0, %v533
    %v550 = vsel %vm522, 0.0, %v534
    %v551 = vsel %vm522, 0.0, %v535
    %v552 = vsel %vm522, 0.0, %v536
    %v553 = vsel %vm522, 0.0, %v537
    %v554 = vsel %vm522, 0.0, %v538
    %v555 = vld [vmem:[#allocation2] ss:$2 sm:$0xf]
    %s556 = scalar_lea.vmem [#allocation2], 16
    %v557 = vld [vmem:[%s556] ss:$2 sm:$0xf]
    %s558 = scalar_lea.vmem [#allocation2], 32
    %v559 = vld [vmem:[%s558] ss:$2 sm:$0xf]
    %s560 = scalar_lea.vmem [#allocation2], 48
    %v561 = vld [vmem:[%s560] ss:$2 sm:$0xf]
    %s562 = scalar_lea.vmem [#allocation2], 72
    %v563 = vld [vmem:[%s562] ss:$2 sm:$0xf]
    %s564 = scalar_lea.vmem [#allocation2], 88
    %v565 = vld [vmem:[%s564] ss:$2 sm:$0xf]
    %s566 = scalar_lea.vmem [#allocation2], 104
    %v567 = vld [vmem:[%s566] ss:$2 sm:$0xf]
    %s568 = scalar_lea.vmem [#allocation2], 120
    %v569 = vld [vmem:[%s568] ss:$2 sm:$0xf]
    %s570 = scalar_lea.vmem %s454, 1 [#allocation2]
    %v571 = vld [vmem:[%s570] ss:$2 sm:$0xf]
    %s572 = scalar_lea.vmem %s454, 17 [#allocation2]
    %v573 = vld [vmem:[%s572] ss:$2 sm:$0xf]
    %s574 = scalar_lea.vmem %s454, 33 [#allocation2]
    %v575 = vld [vmem:[%s574] ss:$2 sm:$0xf]
    %s576 = scalar_lea.vmem %s454, 49 [#allocation2]
    %v577 = vld [vmem:[%s576] ss:$2 sm:$0xf]
    %s578 = scalar_lea.vmem %s454, 73 [#allocation2]
    %v579 = vld [vmem:[%s578] ss:$2 sm:$0xf]
    %s580 = scalar_lea.vmem %s454, 89 [#allocation2]
    %v581 = vld [vmem:[%s580] ss:$2 sm:$0xf]
    %s582 = scalar_lea.vmem %s454, 105 [#allocation2]
    %v583 = vld [vmem:[%s582] ss:$2 sm:$0xf]
    %s584 = scalar_lea.vmem %s454, 121 [#allocation2]
    %v585 = vld [vmem:[%s584] ss:$2 sm:$0xf]
    %v586 = vrot.slane %v571, 4
    %v587 = vsel %vm487, %v586, %v571
    %v588 = vrot.slane %v573, 4
    %v589 = vsel %vm487, %v588, %v573
    %v590 = vrot.slane %v575, 4
    %v591 = vsel %vm487, %v590, %v575
    %v592 = vrot.slane %v577, 4
    %v593 = vsel %vm487, %v592, %v577
    %v594 = vrot.slane %v579, 4
    %v595 = vsel %vm487, %v594, %v579
    %v596 = vrot.slane %v581, 4
    %v597 = vsel %vm487, %v596, %v581
    %v598 = vrot.slane %v583, 4
    %v599 = vsel %vm487, %v598, %v583
    %v600 = vrot.slane %v585, 4
    %v601 = vsel %vm487, %v600, %v585
    %v602 = vrot.slane %v587, 4
    %v603 = vrot.slane %v589, 4
    %v604 = vrot.slane %v591, 4
    %v605 = vrot.slane %v593, 4
    %v606 = vrot.slane %v595, 4
    %v607 = vrot.slane %v597, 4
    %v608 = vrot.slane %v599, 4
    %v609 = vrot.slane %v601, 4
    %v610 = vsel %vm487, %v602, %v571
    %v611 = vsel %vm487, %v603, %v573
    %v612 = vsel %vm487, %v604, %v575
    %v613 = vsel %vm487, %v605, %v577
    %v614 = vsel %vm487, %v606, %v579
    %v615 = vsel %vm487, %v607, %v581
    %v616 = vsel %vm487, %v608, %v583
    %v617 = vsel %vm487, %v609, %v585
    %v626 = vrot.slane %v610, 3
    %v627 = vrot.slane %v611, 3
    %v628 = vrot.slane %v612, 3
    %v629 = vrot.slane %v613, 3
    %v630 = vrot.slane %v614, 3
    %v631 = vrot.slane %v615, 3
    %v632 = vrot.slane %v616, 3
    %v633 = vrot.slane %v617, 3
    %v642 = vsel %vm522, 0.0, %v626
    %v643 = vsel %vm522, 0.0, %v627
    %v644 = vsel %vm522, 0.0, %v628
    %v645 = vsel %vm522, 0.0, %v629
    %v646 = vsel %vm522, 0.0, %v630
    %v647 = vsel %vm522, 0.0, %v631
    %v648 = vsel %vm522, 0.0, %v632
    %v649 = vsel %vm522, 0.0, %v633
    %v650 = vld [vmem:[%s454] ss:$2 sm:$0xf]
    %s651 = scalar_lea.vmem %s454, 16 [#allocation2]
    %v652 = vld [vmem:[%s651] ss:$2 sm:$0xf]
    %s653 = scalar_lea.vmem %s454, 32 [#allocation2]
    %v654 = vld [vmem:[%s653] ss:$2 sm:$0xf]
    %s655 = scalar_lea.vmem %s454, 48 [#allocation2]
    %v656 = vld [vmem:[%s655] ss:$2 sm:$0xf]
    %s657 = scalar_lea.vmem %s454, 72 [#allocation2]
    %v658 = vld [vmem:[%s657] ss:$2 sm:$0xf]
    %s659 = scalar_lea.vmem %s454, 88 [#allocation2]
    %v660 = vld [vmem:[%s659] ss:$2 sm:$0xf]
    %s661 = scalar_lea.vmem %s454, 104 [#allocation2]
    %v662 = vld [vmem:[%s661] ss:$2 sm:$0xf]
    %s663 = scalar_lea.vmem %s454, 120 [#allocation2]
    %v664 = vld [vmem:[%s663] ss:$2 sm:$0xf]
    %s665 = scalar_lea.vmem [#allocation2], 16
    %s666 = scalar_lea.vmem %s665, 1 [#allocation2]
    %v667 = vld [vmem:[%s666] ss:$2 sm:$0xf]
    %s668 = scalar_lea.vmem %s665, 17 [#allocation2]
    %v669 = vld [vmem:[%s668] ss:$2 sm:$0xf]
    %s670 = scalar_lea.vmem %s665, 33 [#allocation2]
    %v671 = vld [vmem:[%s670] ss:$2 sm:$0xf]
    %s672 = scalar_lea.vmem %s665, 49 [#allocation2]
    %v673 = vld [vmem:[%s672] ss:$2 sm:$0xf]
    %s674 = scalar_lea.vmem %s665, 73 [#allocation2]
    %v675 = vld [vmem:[%s674] ss:$2 sm:$0xf]
    %s676 = scalar_lea.vmem %s665, 89 [#allocation2]
    %v677 = vld [vmem:[%s676] ss:$2 sm:$0xf]
    %s678 = scalar_lea.vmem %s665, 105 [#allocation2]
    %v679 = vld [vmem:[%s678] ss:$2 sm:$0xf]
    %s680 = scalar_lea.vmem %s665, 121 [#allocation2]
    %v681 = vld [vmem:[%s680] ss:$2 sm:$0xf]
    %v682 = vrot.slane %v667, 4
    %v683 = vsel %vm487, %v682, %v667
    %v684 = vrot.slane %v669, 4
    %v685 = vsel %vm487, %v684, %v669
    %v686 = vrot.slane %v671, 4
    %v687 = vsel %vm487, %v686, %v671
    %v688 = vrot.slane %v673, 4
    %v689 = vsel %vm487, %v688, %v673
    %v690 = vrot.slane %v675, 4
    %v691 = vsel %vm487, %v690, %v675
    %v692 = vrot.slane %v677, 4
    %v693 = vsel %vm487, %v692, %v677
    %v694 = vrot.slane %v679, 4
    %v695 = vsel %vm487, %v694, %v679
    %v696 = vrot.slane %v681, 4
    %v697 = vsel %vm487, %v696, %v681
    %v698 = vrot.slane %v683, 4
    %v699 = vrot.slane %v685, 4
    %v700 = vrot.slane %v687, 4
    %v701 = vrot.slane %v689, 4
    %v702 = vrot.slane %v691, 4
    %v703 = vrot.slane %v693, 4
    %v704 = vrot.slane %v695, 4
    %v705 = vrot.slane %v697, 4
    %v706 = vsel %vm487, %v698, %v667
    %v707 = vsel %vm487, %v699, %v669
    %v708 = vsel %vm487, %v700, %v671
    %v709 = vsel %vm487, %v701, %v673
    %v710 = vsel %vm487, %v702, %v675
    %v711 = vsel %vm487, %v703, %v677
    %v712 = vsel %vm487, %v704, %v679
    %v713 = vsel %vm487, %v705, %v681
    %v722 = vrot.slane %v706, 3
    %v723 = vrot.slane %v707, 3
    %v724 = vrot.slane %v708, 3
    %v725 = vrot.slane %v709, 3
    %v726 = vrot.slane %v710, 3
    %v727 = vrot.slane %v711, 3
    %v728 = vrot.slane %v712, 3
    %v729 = vrot.slane %v713, 3
    %v738 = vsel %vm522, 0.0, %v722
    %v739 = vsel %vm522, 0.0, %v723
    %v740 = vsel %vm522, 0.0, %v724
    %v741 = vsel %vm522, 0.0, %v725
    %v742 = vsel %vm522, 0.0, %v726
    %v743 = vsel %vm522, 0.0, %v727
    %v744 = vsel %vm522, 0.0, %v728
    %v745 = vsel %vm522, 0.0, %v729
    %v746 = vld [vmem:[%s665] ss:$2 sm:$0xf]
    %s747 = scalar_lea.vmem %s665, 16 [#allocation2]
    %v748 = vld [vmem:[%s747] ss:$2 sm:$0xf]
    %s749 = scalar_lea.vmem %s665, 32 [#allocation2]
    %v750 = vld [vmem:[%s749] ss:$2 sm:$0xf]
    %s751 = scalar_lea.vmem %s665, 48 [#allocation2]
    %v752 = vld [vmem:[%s751] ss:$2 sm:$0xf]
    %s753 = scalar_lea.vmem %s665, 72 [#allocation2]
    %v754 = vld [vmem:[%s753] ss:$2 sm:$0xf]
    %s755 = scalar_lea.vmem %s665, 88 [#allocation2]
    %v756 = vld [vmem:[%s755] ss:$2 sm:$0xf]
    %s757 = scalar_lea.vmem %s665, 104 [#allocation2]
    %v758 = vld [vmem:[%s757] ss:$2 sm:$0xf]
    %s759 = scalar_lea.vmem %s665, 120 [#allocation2]
    %v760 = vld [vmem:[%s759] ss:$2 sm:$0xf]
    %v769 = vcombine.low %v547, %v548
    %v770 = vcombine.low %v549, %v550
    %v771 = vcombine.low %v551, %v552
    %v772 = vcombine.low %v553, %v554
    %v785 = vcombine.low %v555, %v557
    %v786 = vcombine.low %v559, %v561
    %v787 = vcombine.low %v563, %v565
    %v788 = vcombine.low %v567, %v569
    %789 = vrot.lane.b32.xlu0 %v785, 16
    %v790 = vpop.permute.xlu0 %789
    %791 = vrot.lane.b32.xlu0 %v786, 16
    %v792 = vpop.permute.xlu0 %791
    %793 = vrot.lane.b32.xlu0 %v787, 16
    %v794 = vpop.permute.xlu0 %793
    %795 = vrot.lane.b32.xlu0 %v788, 16
    %v796 = vpop.permute.xlu0 %795
    %v809 = vcombine.low %v472, %v474
    %v810 = vcombine.low %v476, %v478
    %v811 = vcombine.low %v480, %v482
    %v812 = vcombine.low %v484, %v486
    %813 = vrot.lane.b32.xlu0 %v809, 32
    %v814 = vpop.permute.xlu0 %813
    %815 = vrot.lane.b32.xlu0 %v810, 32
    %v816 = vpop.permute.xlu0 %815
    %817 = vrot.lane.b32.xlu0 %v811, 32
    %v818 = vpop.permute.xlu0 %817
    %819 = vrot.lane.b32.xlu0 %v812, 32
    %v820 = vpop.permute.xlu0 %819
    %v833 = vcombine.low %v642, %v643
    %v834 = vcombine.low %v644, %v645
    %v835 = vcombine.low %v646, %v647
    %v836 = vcombine.low %v648, %v649
    %837 = vrot.lane.b32.xlu0 %v833, 48
    %v838 = vpop.permute.xlu0 %837
    %839 = vrot.lane.b32.xlu0 %v834, 48
    %v840 = vpop.permute.xlu0 %839
    %841 = vrot.lane.b32.xlu0 %v835, 48
    %v842 = vpop.permute.xlu0 %841
    %843 = vrot.lane.b32.xlu0 %v836, 48
    %v844 = vpop.permute.xlu0 %843
    %v857 = vcombine.low %v650, %v652
    %v858 = vcombine.low %v654, %v656
    %v859 = vcombine.low %v658, %v660
    %v860 = vcombine.low %v662, %v664
    %861 = vrot.lane.b32.xlu0 %v857, 64
    %v862 = vpop.permute.xlu0 %861
    %863 = vrot.lane.b32.xlu0 %v858, 64
    %v864 = vpop.permute.xlu0 %863
    %865 = vrot.lane.b32.xlu0 %v859, 64
    %v866 = vpop.permute.xlu0 %865
    %867 = vrot.lane.b32.xlu0 %v860, 64
    %v868 = vpop.permute.xlu0 %867
    %v881 = vcombine.low %v571, %v573
    %v882 = vcombine.low %v575, %v577
    %v883 = vcombine.low %v579, %v581
    %v884 = vcombine.low %v583, %v585
    %885 = vrot.lane.b32.xlu0 %v881, 80
    %v886 = vpop.permute.xlu0 %885
    %887 = vrot.lane.b32.xlu0 %v882, 80
    %v888 = vpop.permute.xlu0 %887
    %889 = vrot.lane.b32.xlu0 %v883, 80
    %v890 = vpop.permute.xlu0 %889
    %891 = vrot.lane.b32.xlu0 %v884, 80
    %v892 = vpop.permute.xlu0 %891
    %v905 = vcombine.low %v738, %v739
    %v906 = vcombine.low %v740, %v741
    %v907 = vcombine.low %v742, %v743
    %v908 = vcombine.low %v744, %v745
    %909 = vrot.lane.b32.xlu0 %v905, 96
    %v910 = vpop.permute.xlu0 %909
    %911 = vrot.lane.b32.xlu0 %v906, 96
    %v912 = vpop.permute.xlu0 %911
    %913 = vrot.lane.b32.xlu0 %v907, 96
    %v914 = vpop.permute.xlu0 %913
    %915 = vrot.lane.b32.xlu0 %v908, 96
    %v916 = vpop.permute.xlu0 %915
    %v929 = vcombine.low %v746, %v748
    %v930 = vcombine.low %v750, %v752
    %v931 = vcombine.low %v754, %v756
    %v932 = vcombine.low %v758, %v760
    %933 = vrot.lane.b32.xlu0 %v929, 112
    %v934 = vpop.permute.xlu0 %933
    %935 = vrot.lane.b32.xlu0 %v930, 112
    %v936 = vpop.permute.xlu0 %935
    %937 = vrot.lane.b32.xlu0 %v931, 112
    %v938 = vpop.permute.xlu0 %937
    %939 = vrot.lane.b32.xlu0 %v932, 112
    %v940 = vpop.permute.xlu0 %939
    %v953 = vcombine.low %v667, %v669
    %v954 = vcombine.low %v671, %v673
    %v955 = vcombine.low %v675, %v677
    %v956 = vcombine.low %v679, %v681
    %v961 = vsel %vm230, %v769, %v790
    %v962 = vsel %vm230, %v770, %v792
    %v963 = vsel %vm230, %v771, %v794
    %v964 = vsel %vm230, %v772, %v796
    %vm965 = vcmask 261120
    %v966 = vsel %vm965, %v961, %v814
    %v967 = vsel %vm965, %v962, %v816
    %v968 = vsel %vm965, %v963, %v818
    %v969 = vsel %vm965, %v964, %v820
    %vm970 = vcmask 392192
    %v971 = vsel %vm970, %v966, %v838
    %v972 = vsel %vm970, %v967, %v840
    %v973 = vsel %vm970, %v968, %v842
    %v974 = vsel %vm970, %v969, %v844
    %vm975 = vcmask 523264
    %v976 = vsel %vm975, %v971, %v862
    %v977 = vsel %vm975, %v972, %v864
    %v978 = vsel %vm975, %v973, %v866
    %v979 = vsel %vm975, %v974, %v868
    %vm980 = vcmask 654336
    %v981 = vsel %vm980, %v976, %v886
    %v982 = vsel %vm980, %v977, %v888
    %v983 = vsel %vm980, %v978, %v890
    %v984 = vsel %vm980, %v979, %v892
    %vm985 = vcmask 785408
    %v986 = vsel %vm985, %v981, %v910
    %v987 = vsel %vm985, %v982, %v912
    %v988 = vsel %vm985, %v983, %v914
    %v989 = vsel %vm985, %v984, %v916
    %vm990 = vcmask 916480
    %v991 = vsel %vm990, %v986, %v934
    %v992 = vsel %vm990, %v987, %v936
    %v993 = vsel %vm990, %v988, %v938
    %v994 = vsel %vm990, %v989, %v940
    %v995 = vpack.c.bf16 %v992, %v991
    %v996 = vpack.c.bf16 %v954, %v953
    %v997 = vpack.c.bf16 %v994, %v993
    %v998 = vpack.c.bf16 %v956, %v955
    %v999 = vld [vmem:[%s2] sm:$0xf]
    %v1000 = vld [vmem:[%s2 + $0x4] sm:$0xf]
    %v1001 = vld [vmem:[%s2 + $0x8] sm:$0xf]
    %v1002 = vld [vmem:[%s2 + $0xc] sm:$0xf]
    %v1003 = vld [vmem:[%s2 + $0x10] sm:$0xf]
    %v1004 = vld [vmem:[%s2 + $0x14] sm:$0xf]
    %v1005 = vld [vmem:[%s2 + $0x18] sm:$0xf]
    %v1006 = vld [vmem:[%s2 + $0x1c] sm:$0xf]
    %v1007 = vld [vmem:[%s2 + $0x20] sm:$0xf]
    %v1008 = vld [vmem:[%s2 + $0x24] sm:$0xf]
    %v1009 = vld [vmem:[%s2 + $0x28] sm:$0xf]
    %v1010 = vld [vmem:[%s2 + $0x2c] sm:$0xf]
    %v1011 = vld [vmem:[%s2 + $0x30] sm:$0xf]
    %v1012 = vld [vmem:[%s2 + $0x34] sm:$0xf]
    %v1013 = vld [vmem:[%s2 + $0x38] sm:$0xf]
    %v1014 = vld [vmem:[%s2 + $0x3c] sm:$0xf]
    %v1015 = vld [vmem:[%s2 + $0x40] sm:$0xf]
    %v1016 = vld [vmem:[%s2 + $0x44] sm:$0xf]
    %v1035 = vunpack.c.l.b16 %v999
    %v1036 = vunpack.c.l.b16 %v1000
    %v1037 = vunpack.c.l.b16 %v1001
    %v1038 = vunpack.c.l.b16 %v1002
    %v1039 = vunpack.c.l.b16 %v1003
    %v1040 = vunpack.c.l.b16 %v1004
    %v1041 = vunpack.c.l.b16 %v1005
    %v1042 = vunpack.c.l.b16 %v1006
    %v1043 = vunpack.c.l.b16 %v1007
    %v1044 = vunpack.c.l.b16 %v1008
    %v1045 = vunpack.c.l.b16 %v1009
    %v1046 = vunpack.c.l.b16 %v1010
    %v1047 = vunpack.c.l.b16 %v1011
    %v1048 = vunpack.c.l.b16 %v1012
    %v1049 = vunpack.c.l.b16 %v1013
    %v1050 = vunpack.c.l.b16 %v1014
    %v1051 = vunpack.c.l.b16 %v1015
    %v1052 = vunpack.c.l.b16 %v1016
    %v1053 = vpack.c.b16 %v1036, %v1035
    %v1054 = vpack.c.b16 %v1038, %v1037
    %v1055 = vpack.c.b16 %v1040, %v1039
    %v1056 = vpack.c.b16 %v1042, %v1041
    %v1057 = vpack.c.b16 %v1044, %v1043
    %v1058 = vpack.c.b16 %v1046, %v1045
    %v1059 = vpack.c.b16 %v1048, %v1047
    %v1060 = vpack.c.b16 %v1050, %v1049
    %v1061 = vpack.c.b16 %v1052, %v1051
    %v1072 = vsel %vm230, %v996, 0
    %v1075 = vsel %vm230, %v998, 0
    %1077 = vmatprep.subr.bf16.mxu0 0
    %1078 = vmatpush1.bf16.msra.mxu0 %v1053
    %1079 = vmatprep.subr.bf16.mxu0 0
    %1080 = vmatpush1.bf16.msra.mxu0 %v1054
    %1081 = vmatprep.subr.bf16.mxu0 0
    %1082 = vmatpush1.bf16.msra.mxu0 %v1055
    %1083 = vmatprep.subr.bf16.mxu0 0
    %1084 = vmatpush1.bf16.msra.mxu0 %v1056
    %1085 = vmatprep.subr.bf16.mxu0 0
    %1086 = vmatpush1.bf16.msra.mxu0 %v1057
    %1087 = vmatprep.subr.bf16.mxu0 0
    %1088 = vmatpush1.bf16.msra.mxu0 %v1058
    %1089 = vmatprep.subr.bf16.mxu0 0
    %1090 = vmatpush1.bf16.msra.mxu0 %v1059
    %1091 = vmatprep.subr.bf16.mxu0 0
    %1092 = vmatpush1.bf16.msra.mxu0 %v1060
    %1093 = vmatprep.subr.bf16.mxu0 0
    %1094 = vmatpush1.bf16.msra.mxu0 %v1061
    %1095 = vmatprep.subr.bf16.mxu0 0
    %1096 = vmatpush1.bf16.msra.mxu0 0
    %1097 = vmatprep.subr.bf16.mxu0 0
    %1098 = vmatpush1.bf16.msra.mxu0 0
    %1099 = vmatprep.subr.bf16.mxu0 0
    %1100 = vmatpush1.bf16.msra.mxu0 0
    %1101 = vmatprep.subr.bf16.mxu0 0
    %1102 = vmatpush1.bf16.msra.mxu0 0
    %1103 = vmatprep.subr.bf16.mxu0 0
    %1104 = vmatpush1.bf16.msra.mxu0 0
    %1105 = vmatprep.subr.bf16.mxu0 0
    %1106 = vmatpush1.bf16.msra.mxu0 0
    %1107 = vmatprep.subr.bf16.mxu0 0
    %1108 = vmatpush1.bf16.msra.mxu0 0
    %1109 = vmatprep.mubr.bf16.mxu0 %v1072
    %1110 = vmatmul.mubr.bf16.gmra.mrb[0].mxu0 %v995
    %v1111 = vpop.f32.mrb[0].mxu0
    %v1112 = vadd.f32 0.0, %v1111
    %v1113 = vpop.f32.mrb[0].mxu0
    %v1114 = vpop.f32.mrb[0].mxu0
    %v1115 = vadd.f32 0.0, %v1114
    %v1116 = vpop.f32.mrb[0].mxu0
    %1117 = vmatprep.mubr.bf16.mxu0 %v1075
    %1118 = vmatmul.mubr.bf16.gmra.mrb[0].mxu0 %v997
    %v1119 = vpop.f32.mrb[0].mxu0
    %v1120 = vadd.f32 0.0, %v1119
    %v1121 = vpop.f32.mrb[0].mxu0
    %v1122 = vpop.f32.mrb[0].mxu0
    %v1123 = vadd.f32 0.0, %v1122
    %v1124 = vpop.f32.mrb[0].mxu0
    %1125 = vdwg.mxu0
    %v1126 = vsel %vm230, %v1112, 0.0
    %v1127 = vsel %vm230, %v1115, 0.0
    %v1128 = vadd.f32 %v1126, %v1127
    %v1129 = vsel %vm230, %v1120, 0.0
    %v1130 = vadd.f32 %v1128, %v1129
    %v1131 = vsel %vm230, %v1123, 0.0
    %v1132 = vadd.f32 %v1130, %v1131
    %v1133 = vrot.slane %v1132, 4
    %v1134 = vadd.f32 %v1132, %v1133
    %v1135 = vrot.slane %v1134, 2
    %v1136 = vadd.f32 %v1134, %v1135
    %v1137 = vrot.slane %v1136, 1
    %v1138 = vadd.f32 %v1136, %v1137
    %v1139 = vrcp.pop 32.0
    %v1140 = vmul.f32 %v1138, %v1139
    %v1141 = vmul.f32 %v1112, %v1112
    %v1142 = vmul.f32 %v1115, %v1115
    %v1143 = vmul.f32 %v1120, %v1120
    %v1144 = vmul.f32 %v1123, %v1123
    %v1145 = vsel %vm230, %v1141, 0.0
    %v1146 = vsel %vm230, %v1142, 0.0
    %v1147 = vadd.f32 %v1145, %v1146
    %v1148 = vsel %vm230, %v1143, 0.0
    %v1149 = vadd.f32 %v1147, %v1148
    %v1150 = vsel %vm230, %v1144, 0.0
    %v1151 = vadd.f32 %v1149, %v1150
    %v1152 = vrot.slane %v1151, 4
    %v1153 = vadd.f32 %v1151, %v1152
    %v1154 = vrot.slane %v1153, 2
    %v1155 = vadd.f32 %v1153, %v1154
    %v1156 = vrot.slane %v1155, 1
    %v1157 = vadd.f32 %v1155, %v1156
    %v1158 = vmul.f32 %v1157, %v1139
    %v1159 = vmul.f32 %v1140, %v1140
    %v1160 = vsub.f32 %v1158, %v1159
    %v1161 = vmax.f32 %v1160, 0.0
    %v1162 = vadd.f32 %v1161, 1e-05
    %v1163 = vrsqrt.pop %v1162
    %v1164 = vmul.f32 %v24, %v1163
    %v1165 = vmul.f32 %v1140, %v1164
    %v1166 = vsub.f32 %v25, %v1165
    %v1167 = vlaneseq
    %v1168 = vshrl.u32 %v1167, 7
    %v1169 = vsub.s32 0, %v1168
    %v1170 = vrot.slane %v1164, %v1169
    %v1171 = vmul.f32 %v1112, %v1170
    %v1172 = vmul.f32 %v1115, %v1170
    %v1173 = vmul.f32 %v1120, %v1170
    %v1174 = vmul.f32 %v1123, %v1170
    %v1175 = vlaneseq
    %v1176 = vshrl.u32 %v1175, 7
    %v1177 = vsub.s32 0, %v1176
    %v1178 = vrot.slane %v1166, %v1177
    %v1179 = vadd.f32 %v1171, %v1178
    %v1180 = vadd.f32 %v1172, %v1178
    %v1181 = vadd.f32 %v1173, %v1178
    %v1182 = vadd.f32 %v1174, %v1178
    %vm1183 = vcmp.gt.f32.partialorder %v1179, 0.0
    %vm1184 = vcmp.gt.f32.partialorder %v1180, 0.0
    %vm1185 = vcmp.gt.f32.partialorder %v1181, 0.0
    %vm1186 = vcmp.gt.f32.partialorder %v1182, 0.0
    %v1187 = vmul.f32 %v1179, 1.442695
    %v1188 = vpow.pop %v1187
    %v1189 = vmul.f32 %v1180, 1.442695
    %v1190 = vpow.pop %v1189
    %v1191 = vmul.f32 %v1181, 1.442695
    %v1192 = vpow.pop %v1191
    %v1193 = vmul.f32 %v1182, 1.442695
    %v1194 = vpow.pop %v1193
    %v1195 = vsub.f32 %v1188, 1.0
    %v1196 = vsub.f32 %v1190, 1.0
    %v1197 = vsub.f32 %v1192, 1.0
    %v1198 = vsub.f32 %v1194, 1.0
    %v1199 = vsel %vm1183, %v1179, %v1195
    %v1200 = vsel %vm1184, %v1180, %v1196
    %v1201 = vsel %vm1185, %v1181, %v1197
    %v1202 = vsel %vm1186, %v1182, %v1198
    %v1203 = vsel %vm230, %v1199, 0.0
    %v1204 = vsel %vm230, %v1200, 0.0
    %v1205 = vadd.f32 %v1203, %v1204
    %v1206 = vrot.slane %v1205, 4
    %v1207 = vadd.f32 %v1205, %v1206
    %v1208 = vrot.slane %v1207, 2
    %v1209 = vadd.f32 %v1207, %v1208
    %v1210 = vrot.slane %v1209, 1
    %v1211 = vadd.f32 %v1209, %v1210
    %v1212 = vsel %vm230, %v1201, 0.0
    %v1213 = vsel %vm230, %v1202, 0.0
    %v1214 = vadd.f32 %v1212, %v1213
    %v1215 = vrot.slane %v1214, 4
    %v1216 = vadd.f32 %v1214, %v1215
    %v1217 = vrot.slane %v1216, 2
    %v1218 = vadd.f32 %v1216, %v1217
    %v1219 = vrot.slane %v1218, 1
    %v1220 = vadd.f32 %v1218, %v1219
    %v1221 = vrcp.pop 16.0
    %v1222 = vmul.f32 %v1211, %v1221
    %v1223 = vmul.f32 %v1220, %v1221
    %v1224 = vld [vmem:[%s4] sm:$0xff]
    %v1225 = vld [vmem:[%s4 + $0x8] sm:$0xff]
    %v1226 = vld [vmem:[%s4 + $0x10] sm:$0xff]
    %v1227 = vld [vmem:[%s4 + $0x18] sm:$0xff]
    %v1228 = vlaneseq
    %v1229 = vshrl.u32 %v1228, 7
    %v1230 = vsub.s32 0, %v1229
    %v1231 = vrot.slane %v26, %v1230
    %vm1234 = vcmask 1041409
    %v1235 = vsel %vm1234, %v1223, %v1222
    %v1236 = vsel %vm230, %v1235, 0
    %1238 = vmatprep.subr.mxu0 0.0
    %1239 = vmatpush1.msra.mxu0 %v1224
    %1240 = vmatprep.subr.mxu0 0.0
    %1241 = vmatpush1.msra.mxu0 %v1225
    %1242 = vmatprep.subr.mxu0 0.0
    %1243 = vmatpush1.msra.mxu0 0.0
    %1244 = vmatprep.subr.mxu0 0.0
    %1245 = vmatpush1.msra.mxu0 0.0
    %1246 = vmatprep.subr.mxu0 0.0
    %1247 = vmatpush1.msra.mxu0 0.0
    %1248 = vmatprep.subr.mxu0 0.0
    %1249 = vmatpush1.msra.mxu0 0.0
    %1250 = vmatprep.subr.mxu0 0.0
    %1251 = vmatpush1.msra.mxu0 0.0
    %1252 = vmatprep.subr.mxu0 0.0
    %1253 = vmatpush1.msra.mxu0 0.0
    %1254 = vmatprep.subr.mxu0 0.0
    %1255 = vmatpush1.msra.mxu0 0.0
    %1256 = vmatprep.subr.mxu0 0.0
    %1257 = vmatpush1.msra.mxu0 0.0
    %1258 = vmatprep.subr.mxu0 0.0
    %1259 = vmatpush1.msra.mxu0 0.0
    %1260 = vmatprep.subr.mxu0 0.0
    %1261 = vmatpush1.msra.mxu0 0.0
    %1262 = vmatprep.subr.mxu0 0.0
    %1263 = vmatpush1.msra.mxu0 0.0
    %1264 = vmatprep.subr.mxu0 0.0
    %1265 = vmatpush1.msra.mxu0 0.0
    %1266 = vmatprep.subr.mxu0 0.0
    %1267 = vmatpush1.msra.mxu0 0.0
    %1268 = vmatprep.subr.mxu0 0.0
    %1269 = vmatpush1.msra.mxu0 0.0
    %1270 = vmatprep.subr.mxu0 0.0
    %1271 = vmatpush1.msra.mxu0 0.0
    %1272 = vmatprep.subr.mxu0 0.0
    %1273 = vmatpush1.msra.mxu0 0.0
    %1274 = vmatprep.subr.mxu0 0.0
    %1275 = vmatpush1.msra.mxu0 0.0
    %1276 = vmatprep.subr.mxu0 0.0
    %1277 = vmatpush1.msra.mxu0 0.0
    %1278 = vmatprep.subr.mxu0 0.0
    %1279 = vmatpush1.msra.mxu0 0.0
    %1280 = vmatprep.subr.mxu0 0.0
    %1281 = vmatpush1.msra.mxu0 0.0
    %1282 = vmatprep.subr.mxu0 0.0
    %1283 = vmatpush1.msra.mxu0 0.0
    %1284 = vmatprep.subr.mxu0 0.0
    %1285 = vmatpush1.msra.mxu0 0.0
    %1286 = vmatprep.subr.mxu0 0.0
    %1287 = vmatpush1.msra.mxu0 0.0
    %1288 = vmatprep.subr.mxu0 0.0
    %1289 = vmatpush1.msra.mxu0 0.0
    %1290 = vmatprep.subr.mxu0 0.0
    %1291 = vmatpush1.msra.mxu0 0.0
    %1292 = vmatprep.subr.mxu0 0.0
    %1293 = vmatpush1.msra.mxu0 0.0
    %1294 = vmatprep.subr.mxu0 0.0
    %1295 = vmatpush1.msra.mxu0 0.0
    %1296 = vmatprep.subr.mxu0 0.0
    %1297 = vmatpush1.msra.mxu0 0.0
    %1298 = vmatprep.subr.mxu0 0.0
    %1299 = vmatpush1.msra.mxu0 0.0
    %1300 = vmatprep.subr.mxu0 0.0
    %1301 = vmatpush1.msra.mxu0 0.0
    %1302 = vmatprep.mubr.f32.mxu0 0.0
    %1303 = vmatmul.mubr.f32.gmra.mrb[0].mxu0 %v1236
    %v1304 = vpop.f32.mrb[0].mxu0
    %v1305 = vadd.f32 %v1231, %v1304
    %v1306 = vpop.f32.mrb[0].mxu0
    %1307 = vdwg.mxu0
    %v1308 = vmax.f32 %v1305, 0.0
    %v1309 = vlaneseq
    %v1310 = vshrl.u32 %v1309, 7
    %v1311 = vsub.s32 0, %v1310
    %v1312 = vrot.slane %v27, %v1311
    %v1314 = vsel %vm230, %v1308, 0
    %1316 = vmatprep.subr.mxu0 0.0
    %1317 = vmatpush1.msra.mxu0 %v1226
    %1318 = vmatprep.subr.mxu0 0.0
    %1319 = vmatpush1.msra.mxu0 %v1227
    %1320 = vmatprep.subr.mxu0 0.0
    %1321 = vmatpush1.msra.mxu0 0.0
    %1322 = vmatprep.subr.mxu0 0.0
    %1323 = vmatpush1.msra.mxu0 0.0
    %1324 = vmatprep.subr.mxu0 0.0
    %1325 = vmatpush1.msra.mxu0 0.0
    %1326 = vmatprep.subr.mxu0 0.0
    %1327 = vmatpush1.msra.mxu0 0.0
    %1328 = vmatprep.subr.mxu0 0.0
    %1329 = vmatpush1.msra.mxu0 0.0
    %1330 = vmatprep.subr.mxu0 0.0
    %1331 = vmatpush1.msra.mxu0 0.0
    %1332 = vmatprep.subr.mxu0 0.0
    %1333 = vmatpush1.msra.mxu0 0.0
    %1334 = vmatprep.subr.mxu0 0.0
    %1335 = vmatpush1.msra.mxu0 0.0
    %1336 = vmatprep.subr.mxu0 0.0
    %1337 = vmatpush1.msra.mxu0 0.0
    %1338 = vmatprep.subr.mxu0 0.0
    %1339 = vmatpush1.msra.mxu0 0.0
    %1340 = vmatprep.subr.mxu0 0.0
    %1341 = vmatpush1.msra.mxu0 0.0
    %1342 = vmatprep.subr.mxu0 0.0
    %1343 = vmatpush1.msra.mxu0 0.0
    %1344 = vmatprep.subr.mxu0 0.0
    %1345 = vmatpush1.msra.mxu0 0.0
    %1346 = vmatprep.subr.mxu0 0.0
    %1347 = vmatpush1.msra.mxu0 0.0
    %1348 = vmatprep.subr.mxu0 0.0
    %1349 = vmatpush1.msra.mxu0 0.0
    %1350 = vmatprep.subr.mxu0 0.0
    %1351 = vmatpush1.msra.mxu0 0.0
    %1352 = vmatprep.subr.mxu0 0.0
    %1353 = vmatpush1.msra.mxu0 0.0
    %1354 = vmatprep.subr.mxu0 0.0
    %1355 = vmatpush1.msra.mxu0 0.0
    %1356 = vmatprep.subr.mxu0 0.0
    %1357 = vmatpush1.msra.mxu0 0.0
    %1358 = vmatprep.subr.mxu0 0.0
    %1359 = vmatpush1.msra.mxu0 0.0
    %1360 = vmatprep.subr.mxu0 0.0
    %1361 = vmatpush1.msra.mxu0 0.0
    %1362 = vmatprep.subr.mxu0 0.0
    %1363 = vmatpush1.msra.mxu0 0.0
    %1364 = vmatprep.subr.mxu0 0.0
    %1365 = vmatpush1.msra.mxu0 0.0
    %1366 = vmatprep.subr.mxu0 0.0
    %1367 = vmatpush1.msra.mxu0 0.0
    %1368 = vmatprep.subr.mxu0 0.0
    %1369 = vmatpush1.msra.mxu0 0.0
    %1370 = vmatprep.subr.mxu0 0.0
    %1371 = vmatpush1.msra.mxu0 0.0
    %1372 = vmatprep.subr.mxu0 0.0
    %1373 = vmatpush1.msra.mxu0 0.0
    %1374 = vmatprep.subr.mxu0 0.0
    %1375 = vmatpush1.msra.mxu0 0.0
    %1376 = vmatprep.subr.mxu0 0.0
    %1377 = vmatpush1.msra.mxu0 0.0
    %1378 = vmatprep.subr.mxu0 0.0
    %1379 = vmatpush1.msra.mxu0 0.0
    %1380 = vmatprep.mubr.f32.mxu0 0.0
    %1381 = vmatmul.mubr.f32.gmra.mrb[0].mxu0 %v1314
    %v1382 = vpop.f32.mrb[0].mxu0
    %v1383 = vadd.f32 %v1312, %v1382
    %v1384 = vpop.f32.mrb[0].mxu0
    %1385 = vdwg.mxu0
    %v1386 = vxor.u32 %v1383, 2147483648
    %v1387 = vmul.f32 %v1386, 1.442695
    %v1388 = vpow.pop %v1387
    %v1389 = vadd.f32 %v1388, 1.0
    %v1390 = vrcp.pop %v1389
    %v1391 = vmul.f32 1.0, %v1390
    %v1396 = vcombine.high %v1199, %v1199
    %v1397 = vcombine.high %v1200, %v1200
    %v1398 = vcombine.high %v1201, %v1201
    %v1399 = vcombine.high %v1202, %v1202
    %v1406 = vunpack.c.l.s4 1966171168
    %v1407 = vunpack.c.0.s8 %v1406
    %v1408 = vlaneseq
    %v1409 = vshrl.u32 %v1408, 7
    %v1410 = vsub.s32 %v1407, %v1409
    %v1411 = vrot.slane %v1391, %v1410
    %v1412 = vcombine.high %v1411, %v1411
    %v1414 = vunpack.c.l.s4 1966171168
    %v1415 = vunpack.c.0.s8 %v1414
    %v1416 = vlaneseq
    %v1417 = vshrl.u32 %v1416, 7
    %v1418 = vsub.s32 %v1415, %v1417
    %v1419 = vrot.slane %v1411, %v1418
    %v1421 = vunpack.c.l.s4 1966171168
    %v1422 = vunpack.c.0.s8 %v1421
    %v1423 = vlaneseq
    %v1424 = vshrl.u32 %v1423, 7
    %v1425 = vsub.s32 %v1422, %v1424
    %v1426 = vrot.slane %v1412, %v1425
    %v1427 = vlaneseq
    %v1428 = vshrl.u32 %v1427, 7
    %v1429 = vsub.s32 0, %v1428
    %v1430 = vrot.slane %v1419, %v1429
    %v1431 = vlaneseq
    %v1432 = vshrl.u32 %v1431, 7
    %v1433 = vsub.s32 0, %v1432
    %v1434 = vrot.slane %v1426, %v1433
    %v1437 = vmul.f32 %v1199, %v1430
    %v1438 = vmul.f32 %v1396, %v1430
    %v1439 = vmul.f32 %v1200, %v1430
    %v1440 = vmul.f32 %v1397, %v1430
    %v1441 = vmul.f32 %v1201, %v1434
    %v1442 = vmul.f32 %v1398, %v1434
    %v1443 = vmul.f32 %v1202, %v1434
    %v1444 = vmul.f32 %v1399, %v1434
    %vm1445 = vcmask 125952
    %1446 = vst.msk [vmem:[#allocation3] sm:$0xf] %vm1445, %v1437
    %1447 = vst.msk [vmem:[#allocation3 + $0x4] sm:$0xf] %vm1445, %v1438
    %1448 = vst.msk [vmem:[#allocation3 + $0x8] sm:$0xf] %vm1445, %v1439
    %1449 = vst.msk [vmem:[#allocation3 + $0xc] sm:$0xf] %vm1445, %v1440
    %1450 = vst.msk [vmem:[#allocation3 + $0x10] sm:$0xf] %vm1445, %v1441
    %1451 = vst.msk [vmem:[#allocation3 + $0x14] sm:$0xf] %vm1445, %v1442
    %1452 = vst.msk [vmem:[#allocation3 + $0x18] sm:$0xf] %vm1445, %v1443
    %1453 = vst.msk [vmem:[#allocation3 + $0x1c] sm:$0xf] %vm1445, %v1444
    // Predicated region
    $region22: #{double_conv_forward.1} parent=1 // pred_check
      _
    $region23: #{double_conv_forward.1} parent=1 // pred_check_branch
      %1455 = sbr.rel (0) target = $region25
    $region24: #{double_conv_forward.1} parent=1 // pred_region
      %s1457 = ssub.s32 512, 512
      %1458 = vsyncadd [#allocation4], %s1457
      %s1459 = sshll.u32 [#allocation3], 4
      %s1460 = int_to_ptr.vmem [resolvable:$true] %s1459
      %1465 = dma.vmem_to_hbm [thread:$0]  %s1460, 512, %s5, [#allocation4], 64, 64, 4
    $region25: #{double_conv_forward.1} parent=1 // pred_fallthru
      _
    // Predicated region
    $region26: #{double_conv_forward.1} parent=1 // pred_check
      _
    $region27: #{double_conv_forward.1} parent=1 // pred_check_branch
      %1467 = sbr.rel (0) target = $region29
    $region28: #{double_conv_forward.1} parent=1 // pred_region
      %1468 = dma.done [#allocation4], 512
    $region29: #{double_conv_forward.1} parent=1 // pred_fallthru
      _
    %1469 = vsyncpa [#allocation4], 1

</llo_original>
